<compile_context>
chip_gen: v7x
topology: tpu7x:2x2x1
jax: 0.10.0
libtpu: 0.0.40
codegen_flags: <defaults>
</compile_context>

<pallas_src>
import jax
import jax.numpy as jnp
import numpy as np
from jax.experimental import pallas as pl
from jax.experimental.pallas import tpu as pltpu

# ------------------------- synthetic config (mirrors __init__) -------------------------
VOCAB_SIZE   = 50
NEMBEDDING   = 16
KERNEL_SIZES = [(3, 16), (3, 8)]   # (height, width); width must equal previous feature dim
NKERNELS     = [8, 8]
NHIDDEN      = 32
NLAYERS      = 2                   # stacked LSTM
DROPOUT      = 0.0                 # inference semantics; inter-layer dropout inert
LABEL_SIZE   = 5
BATCH        = 2
SEQ          = 12
LANE         = 128

assert KERNEL_SIZES[0][1] == NEMBEDDING
assert KERNEL_SIZES[1][1] == NKERNELS[0]


# ---------------------------------- kernel factory ----------------------------------
def make_crnn_kernel(w_layout, dims):
    """Returns the fused CRNN kernel closed over the static weight-slab layout."""
    V, E     = dims['V'], dims['E']
    N1, N2   = dims['N1'], dims['N2']
    KH1, KH2 = dims['KH1'], dims['KH2']
    H  = dims['H']
    FH = 4 * H

    def wpiece(w_ref, name):
        off, r, c = w_layout[name]
        return w_ref[off:off + r, 0:c]          # static, tile-aligned slice

    def kernel(ids_ref,      # (S*B, 1) int32, TIME-major rows: p = s*B + b
               w_ref,        # (R, 8H)  bf16 packed weight slab
               b_ref,        # (5, 128) f32 packed bias slab [c1b, c2b, b0, b1, db]
               out_ref,      # (B, 128) f32 lane-padded logits
               gin_ref):     # (L2, B, 4H) f32 scratch: hoisted layer-0 input projection
        f32, bf16 = jnp.float32, jnp.bfloat16

        B  = out_ref.shape[0]
        P  = ids_ref.shape[0]
        S  = P // B                       # derived from runtime shapes (not a global)
        L1 = S - KH1 + 1
        L2 = L1 - KH2 + 1
        P1 = L1 * B
        P2 = L2 * B

        # ---- biases (one f32 row each) ----
        c1b = b_ref[0:1, 0:N1]
        c2b = b_ref[1:2, 0:N2]
        b0  = b_ref[2:3, 0:FH]
        b1  = b_ref[3:4, 0:FH]
        db  = b_ref[4:5, :]               # lane-padded head bias (first LABEL cols real)

        # ---- embedding as an exact one-hot matmul ----
        # (OOB ids -> all-zero row == zero embedding; padding_idx=0 row is zero too.)
        tok    = ids_ref[...]                                            # (P, 1)
        iota_v = jax.lax.broadcasted_iota(jnp.int32, (P, V), 1)
        onehot = (tok == iota_v).astype(bf16)                            # (P, V)
        x = jnp.dot(onehot, wpiece(w_ref, 'emb'),
                    preferred_element_type=f32)                          # (P, E) time-major

        # ---- conv1 + ReLU: one MXU dot per tap, batch+time folded into M, all rows valid ----
        # TODO(synk): could be a single im2col dot (K = KH1*E) — small win, taps kept for clarity.
        x_bf = x.astype(bf16)
        acc1 = jnp.dot(x_bf[0:P1, :], wpiece(w_ref, 'c1w0'), preferred_element_type=f32)
        for dh in range(1, KH1):
            acc1 = acc1 + jnp.dot(x_bf[dh*B:dh*B + P1, :], wpiece(w_ref, f'c1w{dh}'),
                                  preferred_element_type=f32)
        x1 = jnp.maximum(acc1 + c1b, 0.0)                                # (P1, N1)

        # ---- conv2 + ReLU ----
        x1_bf = x1.astype(bf16)
        acc2 = jnp.dot(x1_bf[0:P2, :], wpiece(w_ref, 'c2w0'), preferred_element_type=f32)
        for dh in range(1, KH2):
            acc2 = acc2 + jnp.dot(x1_bf[dh*B:dh*B + P2, :], wpiece(w_ref, f'c2w{dh}'),
                                  preferred_element_type=f32)
        x2 = jnp.maximum(acc2 + c2b, 0.0)                                # (P2, N2) time-major

        # ---- LSTM layer-0 input projection hoisted off the recurrence (one matmul),
        #      staged time-major so step t reads an aligned (B, 4H) tile ----
        gin = jnp.dot(x2.astype(bf16), wpiece(w_ref, 'wih0'),
                      preferred_element_type=f32) + b0                   # (P2, 4H)
        for t in range(L2):
            gin_ref[t] = gin[t*B:(t+1)*B, :]

        whh_blk = wpiece(w_ref, 'whh')    # (2H, 8H) = blockdiag(whh0, whh1), bf16
        wih1    = wpiece(w_ref, 'wih1')   # (H, 4H) bf16
        dw      = wpiece(w_ref, 'dw')     # (H, 128) bf16 (lane-padded head)

        def apply_gates(g, c):            # gate column order [i, f, o | g]
            sg = jax.nn.sigmoid(g[:, :3*H])
            i, f, o = sg[:, :H], sg[:, H:2*H], sg[:, 2*H:3*H]
            gg = jnp.tanh(g[:, 3*H:])
            c_new = f * c + i * gg
            return o * jnp.tanh(c_new), c_new

        h0 = jnp.zeros((B, H), f32); c0 = jnp.zeros((B, H), f32)
        h1 = jnp.zeros((B, H), f32); c1 = jnp.zeros((B, H), f32)
        # TODO(synk): LSTM inter-layer dropout omitted — inert at p=0.0 / eval.
        # Static unroll (L2 == 8); switch to lax.fori_loop(..., unroll=True) if L2/H grow.
        for t in range(L2):
            # both recurrent projections fused into one dot off the previous state
            hcat = jnp.concatenate([h0, h1], axis=1).astype(bf16)        # (B, 2H)
            r = jnp.dot(hcat, whh_blk, preferred_element_type=f32)       # (B, 8H)
            # layer 0: precomputed input gates + recurrent term
            g0 = gin_ref[t] + r[:, :FH]
            h0, c0 = apply_gates(g0, c0)
            # layer 1: only remaining dependent matmul (K = H)
            g1 = jnp.dot(h0.astype(bf16), wih1, preferred_element_type=f32) + r[:, FH:] + b1
            h1, c1 = apply_gates(g1, c1)

        # ---- dense head: lane-dense (B, 128) store ----
        out_ref[...] = jnp.dot(h1.astype(bf16), dw, preferred_element_type=f32) + db

    return kernel


# ---------------------------------- weight packing ----------------------------------
def _reorder_gates(w, H):
    """Gate columns: PyTorch [i, f, g, o] -> [i, f, o, g]."""
    return jnp.concatenate([w[..., :2*H], w[..., 3*H:], w[..., 2*H:3*H]], axis=-1)


def _pack_rows(pieces, lane_width, row_align, dtype):
    """Concat 2-D pieces along rows into one lane-padded slab; return (slab, layout)."""
    layout, blocks, off = {}, [], 0
    for name, a in pieces:
        a = jnp.asarray(a, jnp.float32)
        r, c = a.shape
        rpad = (-r) % row_align
        blocks.append(jnp.pad(a, ((0, rpad), (0, lane_width - c))))
        layout[name] = (off, r, c)
        off += r + rpad
    return jnp.concatenate(blocks, axis=0).astype(dtype), layout


def prepare_kernel_params(params):
    """One-time packing: gate reorder, blockdiag fuse, lane pad, two-slab layout."""
    H = NHIDDEN
    wih0 = _reorder_gates(params['wih0'], H)
    whh0 = _reorder_gates(params['whh0'], H)
    wih1 = _reorder_gates(params['wih1'], H)
    whh1 = _reorder_gates(params['whh1'], H)
    b0   = _reorder_gates(params['b0'], H)
    b1   = _reorder_gates(params['b1'], H)

    # [h0, h1] @ blockdiag(whh0, whh1) == [h0 @ whh0 | h1 @ whh1]
    whh_blk = jnp.zeros((2*H, 8*H), jnp.float32)
    whh_blk = whh_blk.at[:H, :4*H].set(whh0).at[H:, 4*H:].set(whh1)

    dw_pad = jnp.zeros((H, LANE), jnp.float32).at[:, :LABEL_SIZE].set(params['dw'])
    db_pad = jnp.zeros((1, LANE), jnp.float32).at[:, :LABEL_SIZE].set(params['db'])

    c1w, c2w = params['c1w'], params['c2w']
    KH1, KH2 = c1w.shape[0], c2w.shape[0]

    w_pieces = [('emb', params['embedding'])]
    w_pieces += [(f'c1w{d}', c1w[d]) for d in range(KH1)]
    w_pieces += [(f'c2w{d}', c2w[d]) for d in range(KH2)]
    w_pieces += [('wih0', wih0), ('whh', whh_blk), ('wih1', wih1), ('dw', dw_pad)]
    # bf16 weight slab, 8H lanes wide, 16-row (bf16 tile) aligned piece offsets
    w_slab, w_layout = _pack_rows(w_pieces, lane_width=8*H, row_align=16, dtype=jnp.bfloat16)

    # f32 bias slab, fixed row order [c1b, c2b, b0, b1, db]
    b_slab, _ = _pack_rows([('c1b', params['c1b']), ('c2b', params['c2b']),
                            ('b0', b0), ('b1', b1), ('db', db_pad)],
                           lane_width=LANE, row_align=1, dtype=jnp.float32)

    dims = dict(V=VOCAB_SIZE, E=NEMBEDDING, N1=NKERNELS[0], N2=NKERNELS[1],
                KH1=KH1, KH2=KH2, H=H)
    return dict(w_slab=w_slab, b_slab=b_slab, w_layout=w_layout, dims=dims)


# ---------------------------------- wrapper ----------------------------------
def make_forward(kp):
    """Builds the jitted forward fn bound to one prepared parameter set."""
    kernel = make_crnn_kernel(kp['w_layout'], kp['dims'])
    dims = kp['dims']
    w_slab, b_slab = kp['w_slab'], kp['b_slab']

    @jax.jit
    def forward(entity_ids, seq_len):
        # seq_len is unused by the PyTorch forward (no packing) — kept for parity.
        del seq_len
        S, B = entity_ids.shape
        L2 = S - dims['KH1'] - dims['KH2'] + 2
        # time-major flat id rows (p = s*B + b): plain reshape, no transpose needed
        ids = entity_ids.reshape(S * B, 1).astype(jnp.int32)
        vmem = pl.BlockSpec(memory_space=pltpu.MemorySpace.VMEM)
        out = pl.pallas_call(
            kernel,
            out_shape=jax.ShapeDtypeStruct((B, LANE), jnp.float32),
            in_specs=[vmem, vmem, vmem],       # 3 copy-in DMAs: ids + 2 packed slabs
            out_specs=vmem,
            scratch_shapes=[pltpu.VMEM((L2, B, 4 * dims['H']), jnp.float32)],
            # NOTE (v7x): grid-less => single TensorCore. Add a "parallel" batch grid
            # axis (and budget VMEM against 64 MiB, not 128) only once B grows well
            # past a few 8-sublane blocks; at tiny B the serial LSTM dominates.
        )(ids, w_slab, b_slab)
        return out[:, :LABEL_SIZE]

    return forward


# ---------------------------------- reference (pure JAX, f32) ----------------------------------
def reference_forward(entity_ids, params):
    x = jnp.take(params['embedding'], entity_ids, axis=0)
    x = jnp.transpose(x, (1, 0, 2)).astype(jnp.float32)       # (B, S, E)
    B = x.shape[0]
    c1w, c1b = params['c1w'], params['c1b']
    KH1 = c1w.shape[0]; L1 = x.shape[1] - KH1 + 1
    acc1 = sum(jnp.einsum('ble,en->bln', x[:, dh:dh + L1, :], c1w[dh]) for dh in range(KH1))
    x1 = jax.nn.relu(acc1 + c1b)
    c2w, c2b = params['c2w'], params['c2b']
    KH2 = c2w.shape[0]; L2 = L1 - KH2 + 1
    acc2 = sum(jnp.einsum('blc,cn->bln', x1[:, dh:dh + L2, :], c2w[dh]) for dh in range(KH2))
    x2 = jax.nn.relu(acc2 + c2b)

    H = NHIDDEN

    def cell(x_t, h, c, wih, whh, b):
        g = x_t @ wih + h @ whh + b
        i = jax.nn.sigmoid(g[:, :H]); f = jax.nn.sigmoid(g[:, H:2 * H])
        gg = jnp.tanh(g[:, 2 * H:3 * H]); o = jax.nn.sigmoid(g[:, 3 * H:])
        c = f * c + i * gg
        h = o * jnp.tanh(c)
        return h, c

    h0 = jnp.zeros((B, H)); c0 = jnp.zeros((B, H))
    h1 = jnp.zeros((B, H)); c1 = jnp.zeros((B, H))
    for t in range(L2):
        x_t = x2[:, t, :]
        h0, c0 = cell(x_t, h0, c0, params['wih0'], params['whh0'], params['b0'])
        h1, c1 = cell(h0, h1, c1, params['wih1'], params['whh1'], params['b1'])
    return h1 @ params['dw'] + params['db']


# ---------------------------------- params ----------------------------------
def init_params(key):
    ks = jax.random.split(key, 12)
    s = 0.1
    H = NHIDDEN
    emb = s * jax.random.normal(ks[0], (VOCAB_SIZE, NEMBEDDING), jnp.float32)
    emb = emb.at[0].set(0.0)   # padding_idx=0
    params = dict(
        embedding=emb,
        # conv weights stored as (KH, in_width, out_channels) == PyTorch (Nk,1,KH,KW) pre-transposed
        c1w=s * jax.random.normal(ks[1], (KERNEL_SIZES[0][0], KERNEL_SIZES[0][1], NKERNELS[0]), jnp.float32),
        c1b=s * jax.random.normal(ks[2], (1, NKERNELS[0]), jnp.float32),
        c2w=s * jax.random.normal(ks[3], (KERNEL_SIZES[1][0], KERNEL_SIZES[1][1], NKERNELS[1]), jnp.float32),
        c2b=s * jax.random.normal(ks[4], (1, NKERNELS[1]), jnp.float32),
        # LSTM weights pre-transposed to (in, 4H); gate order [i, f, g, o]; b = b_ih + b_hh
        wih0=s * jax.random.normal(ks[5], (NKERNELS[-1], 4 * H), jnp.float32),
        whh0=s * jax.random.normal(ks[6], (H, 4 * H), jnp.float32),
        b0=s * jax.random.normal(ks[7], (1, 4 * H), jnp.float32),
        wih1=s * jax.random.normal(ks[8], (H, 4 * H), jnp.float32),
        whh1=s * jax.random.normal(ks[9], (H, 4 * H), jnp.float32),
        b1=s * jax.random.normal(ks[10], (1, 4 * H), jnp.float32),
        dw=s * jax.random.normal(ks[11], (H, LABEL_SIZE), jnp.float32),
        db=jnp.zeros((1, LABEL_SIZE), jnp.float32),
    )
    return params


if __name__ == "__main__":
    key = jax.random.PRNGKey(0)
    pkey, ikey = jax.random.split(key)
    params = init_params(pkey)
    kparams = prepare_kernel_params(params)
    forward = make_forward(kparams)

    entity_ids = jax.random.randint(ikey, (SEQ, BATCH), 0, VOCAB_SIZE, dtype=jnp.int32)
    seq_len = jnp.full((BATCH,), SEQ, dtype=jnp.int32)   # unused by forward (as in PyTorch)

    logits = forward(entity_ids, seq_len)
    jax.block_until_ready(logits)

    ref = reference_forward(entity_ids, params)
    assert logits.shape == (BATCH, LABEL_SIZE)
    # bf16 MXU operands (f32 accumulation) => looser tolerance than the pure-f32 check
    np.testing.assert_allclose(np.asarray(logits), np.asarray(ref, dtype=np.float32),
                               rtol=2e-2, atol=1e-2)
    print("KERNEL_OK")
</pallas_src>

<mosaic_0001>
module attributes {stable_mosaic.version = 11 : i64} {
  func.func @kernel(%arg0: memref<24x1xi32, #tpu.memory_space<vmem>>, %arg1: memref<304x256xbf16, #tpu.memory_space<vmem>>, %arg2: memref<5x128xf32, #tpu.memory_space<vmem>>, %arg3: memref<2x128xf32, #tpu.memory_space<vmem>>, %arg4: memref<8x2x128xf32, #tpu.memory_space<vmem>>) attributes {dimension_semantics = [], scalar_prefetch = 0 : i64, scratch_operands = 1 : i64, tpu.core_type = #tpu.core_type<tc>} {
    %c0 = arith.constant 0 : index
    %c0_0 = arith.constant 0 : index
    %0 = vector.load %arg2[%c0, %c0_0] : memref<5x128xf32, #tpu.memory_space<vmem>>, vector<1x8xf32>
    %c1 = arith.constant 1 : index
    %c0_1 = arith.constant 0 : index
    %1 = vector.load %arg2[%c1, %c0_1] : memref<5x128xf32, #tpu.memory_space<vmem>>, vector<1x8xf32>
    %c2 = arith.constant 2 : index
    %c0_2 = arith.constant 0 : index
    %2 = vector.load %arg2[%c2, %c0_2] : memref<5x128xf32, #tpu.memory_space<vmem>>, vector<1x128xf32>
    %c3 = arith.constant 3 : index
    %c0_3 = arith.constant 0 : index
    %3 = vector.load %arg2[%c3, %c0_3] : memref<5x128xf32, #tpu.memory_space<vmem>>, vector<1x128xf32>
    %c4 = arith.constant 4 : index
    %c0_4 = arith.constant 0 : index
    %4 = vector.load %arg2[%c4, %c0_4] : memref<5x128xf32, #tpu.memory_space<vmem>>, vector<1x128xf32>
    %c0_5 = arith.constant 0 : index
    %c0_6 = arith.constant 0 : index
    %5 = vector.load %arg0[%c0_5, %c0_6] : memref<24x1xi32, #tpu.memory_space<vmem>>, vector<24x1xi32>
    %6 = tpu.iota {dimensions = array<i32: 1>} : vector<24x50xi32>
    %7 = vector.broadcast %5 : vector<24x1xi32> to vector<24x50xi32>
    %8 = arith.cmpi eq, %7, %6 : vector<24x50xi32>
    %9 = arith.extui %8 : vector<24x50xi1> to vector<24x50xi32>
    %10 = arith.sitofp %9 : vector<24x50xi32> to vector<24x50xf32>
    %11 = arith.truncf %10 : vector<24x50xf32> to vector<24x50xbf16>
    %c0_7 = arith.constant 0 : index
    %c0_8 = arith.constant 0 : index
    %12 = vector.load %arg1[%c0_7, %c0_8] : memref<304x256xbf16, #tpu.memory_space<vmem>>, vector<50x16xbf16>
    %cst = arith.constant dense<0.000000e+00> : vector<24x16xf32>
    %13 = tpu.matmul %11, %12, %cst {dimension_numbers = #tpu.dot_dimension_numbers<[1], [0], [0], [1], [0, 0, 1, 1], [], []>} : vector<24x50xbf16>, vector<50x16xbf16>, vector<24x16xf32> -> vector<24x16xf32>
    %14 = arith.truncf %13 : vector<24x16xf32> to vector<24x16xbf16>
    %15 = vector.extract_strided_slice %14 {offsets = [0, 0], sizes = [20, 16], strides = [1, 1]} : vector<24x16xbf16> to vector<20x16xbf16>
    %c64 = arith.constant 64 : index
    %c0_9 = arith.constant 0 : index
    %16 = vector.load %arg1[%c64, %c0_9] : memref<304x256xbf16, #tpu.memory_space<vmem>>, vector<16x8xbf16>
    %cst_10 = arith.constant dense<0.000000e+00> : vector<20x8xf32>
    %17 = tpu.matmul %15, %16, %cst_10 {dimension_numbers = #tpu.dot_dimension_numbers<[1], [0], [0], [1], [0, 0, 1, 1], [], []>} : vector<20x16xbf16>, vector<16x8xbf16>, vector<20x8xf32> -> vector<20x8xf32>
    %18 = vector.extract_strided_slice %14 {offsets = [2, 0], sizes = [20, 16], strides = [1, 1]} : vector<24x16xbf16> to vector<20x16xbf16>
    %c80 = arith.constant 80 : index
    %c0_11 = arith.constant 0 : index
    %19 = vector.load %arg1[%c80, %c0_11] : memref<304x256xbf16, #tpu.memory_space<vmem>>, vector<16x8xbf16>
    %cst_12 = arith.constant dense<0.000000e+00> : vector<20x8xf32>
    %20 = tpu.matmul %18, %19, %cst_12 {dimension_numbers = #tpu.dot_dimension_numbers<[1], [0], [0], [1], [0, 0, 1, 1], [], []>} : vector<20x16xbf16>, vector<16x8xbf16>, vector<20x8xf32> -> vector<20x8xf32>
    %21 = arith.addf %17, %20 : vector<20x8xf32>
    %22 = vector.extract_strided_slice %14 {offsets = [4, 0], sizes = [20, 16], strides = [1, 1]} : vector<24x16xbf16> to vector<20x16xbf16>
    %c96 = arith.constant 96 : index
    %c0_13 = arith.constant 0 : index
    %23 = vector.load %arg1[%c96, %c0_13] : memref<304x256xbf16, #tpu.memory_space<vmem>>, vector<16x8xbf16>
    %cst_14 = arith.constant dense<0.000000e+00> : vector<20x8xf32>
    %24 = tpu.matmul %22, %23, %cst_14 {dimension_numbers = #tpu.dot_dimension_numbers<[1], [0], [0], [1], [0, 0, 1, 1], [], []>} : vector<20x16xbf16>, vector<16x8xbf16>, vector<20x8xf32> -> vector<20x8xf32>
    %25 = arith.addf %21, %24 : vector<20x8xf32>
    %26 = vector.broadcast %0 : vector<1x8xf32> to vector<20x8xf32>
    %27 = arith.addf %25, %26 : vector<20x8xf32>
    %cst_15 = arith.constant 0.000000e+00 : f32
    %28 = vector.broadcast %cst_15 : f32 to vector<20x8xf32>
    %29 = arith.maximumf %27, %28 : vector<20x8xf32>
    %30 = arith.truncf %29 : vector<20x8xf32> to vector<20x8xbf16>
    %31 = vector.extract_strided_slice %30 {offsets = [0, 0], sizes = [16, 8], strides = [1, 1]} : vector<20x8xbf16> to vector<16x8xbf16>
    %c112 = arith.constant 112 : index
    %c0_16 = arith.constant 0 : index
    %32 = vector.load %arg1[%c112, %c0_16] : memref<304x256xbf16, #tpu.memory_space<vmem>>, vector<8x8xbf16>
    %cst_17 = arith.constant dense<0.000000e+00> : vector<16x8xf32>
    %33 = tpu.matmul %31, %32, %cst_17 {dimension_numbers = #tpu.dot_dimension_numbers<[1], [0], [0], [1], [0, 0, 1, 1], [], []>} : vector<16x8xbf16>, vector<8x8xbf16>, vector<16x8xf32> -> vector<16x8xf32>
    %34 = vector.extract_strided_slice %30 {offsets = [2, 0], sizes = [16, 8], strides = [1, 1]} : vector<20x8xbf16> to vector<16x8xbf16>
    %c128 = arith.constant 128 : index
    %c0_18 = arith.constant 0 : index
    %35 = vector.load %arg1[%c128, %c0_18] : memref<304x256xbf16, #tpu.memory_space<vmem>>, vector<8x8xbf16>
    %cst_19 = arith.constant dense<0.000000e+00> : vector<16x8xf32>
    %36 = tpu.matmul %34, %35, %cst_19 {dimension_numbers = #tpu.dot_dimension_numbers<[1], [0], [0], [1], [0, 0, 1, 1], [], []>} : vector<16x8xbf16>, vector<8x8xbf16>, vector<16x8xf32> -> vector<16x8xf32>
    %37 = arith.addf %33, %36 : vector<16x8xf32>
    %38 = vector.extract_strided_slice %30 {offsets = [4, 0], sizes = [16, 8], strides = [1, 1]} : vector<20x8xbf16> to vector<16x8xbf16>
    %c144 = arith.constant 144 : index
    %c0_20 = arith.constant 0 : index
    %39 = vector.load %arg1[%c144, %c0_20] : memref<304x256xbf16, #tpu.memory_space<vmem>>, vector<8x8xbf16>
    %cst_21 = arith.constant dense<0.000000e+00> : vector<16x8xf32>
    %40 = tpu.matmul %38, %39, %cst_21 {dimension_numbers = #tpu.dot_dimension_numbers<[1], [0], [0], [1], [0, 0, 1, 1], [], []>} : vector<16x8xbf16>, vector<8x8xbf16>, vector<16x8xf32> -> vector<16x8xf32>
    %41 = arith.addf %37, %40 : vector<16x8xf32>
    %42 = vector.broadcast %1 : vector<1x8xf32> to vector<16x8xf32>
    %43 = arith.addf %41, %42 : vector<16x8xf32>
    %cst_22 = arith.constant 0.000000e+00 : f32
    %44 = vector.broadcast %cst_22 : f32 to vector<16x8xf32>
    %45 = arith.maximumf %43, %44 : vector<16x8xf32>
    %46 = arith.truncf %45 : vector<16x8xf32> to vector<16x8xbf16>
    %c160 = arith.constant 160 : index
    %c0_23 = arith.constant 0 : index
    %47 = vector.load %arg1[%c160, %c0_23] : memref<304x256xbf16, #tpu.memory_space<vmem>>, vector<8x128xbf16>
    %cst_24 = arith.constant dense<0.000000e+00> : vector<16x128xf32>
    %48 = tpu.matmul %46, %47, %cst_24 {dimension_numbers = #tpu.dot_dimension_numbers<[1], [0], [0], [1], [0, 0, 1, 1], [], []>} : vector<16x8xbf16>, vector<8x128xbf16>, vector<16x128xf32> -> vector<16x128xf32>
    %49 = vector.broadcast %2 : vector<1x128xf32> to vector<16x128xf32>
    %50 = arith.addf %48, %49 : vector<16x128xf32>
    %51 = vector.extract_strided_slice %50 {offsets = [0, 0], sizes = [2, 128], strides = [1, 1]} : vector<16x128xf32> to vector<2x128xf32>
    %c0_25 = arith.constant 0 : index
    %c0_26 = arith.constant 0 : index
    %c0_27 = arith.constant 0 : index
    %52 = vector.load %arg4[%c0_25, %c0_26, %c0_27] : memref<8x2x128xf32, #tpu.memory_space<vmem>>, vector<1x2x128xf32>
    %53 = vector.shape_cast %52 : vector<1x2x128xf32> to vector<2x128xf32>
    %54 = vector.shape_cast %51 : vector<2x128xf32> to vector<1x2x128xf32>
    tpu.vector_store %arg4[%c0_25, %c0_26, %c0_27], %54 {strides = array<i32>} : memref<8x2x128xf32, #tpu.memory_space<vmem>>, vector<1x2x128xf32>,
    %55 = vector.extract_strided_slice %50 {offsets = [2, 0], sizes = [2, 128], strides = [1, 1]} : vector<16x128xf32> to vector<2x128xf32>
    %c1_28 = arith.constant 1 : index
    %c0_29 = arith.constant 0 : index
    %c0_30 = arith.constant 0 : index
    %56 = vector.load %arg4[%c1_28, %c0_29, %c0_30] : memref<8x2x128xf32, #tpu.memory_space<vmem>>, vector<1x2x128xf32>
    %57 = vector.shape_cast %56 : vector<1x2x128xf32> to vector<2x128xf32>
    %58 = vector.shape_cast %55 : vector<2x128xf32> to vector<1x2x128xf32>
    tpu.vector_store %arg4[%c1_28, %c0_29, %c0_30], %58 {strides = array<i32>} : memref<8x2x128xf32, #tpu.memory_space<vmem>>, vector<1x2x128xf32>,
    %59 = vector.extract_strided_slice %50 {offsets = [4, 0], sizes = [2, 128], strides = [1, 1]} : vector<16x128xf32> to vector<2x128xf32>
    %c2_31 = arith.constant 2 : index
    %c0_32 = arith.constant 0 : index
    %c0_33 = arith.constant 0 : index
    %60 = vector.load %arg4[%c2_31, %c0_32, %c0_33] : memref<8x2x128xf32, #tpu.memory_space<vmem>>, vector<1x2x128xf32>
    %61 = vector.shape_cast %60 : vector<1x2x128xf32> to vector<2x128xf32>
    %62 = vector.shape_cast %59 : vector<2x128xf32> to vector<1x2x128xf32>
    tpu.vector_store %arg4[%c2_31, %c0_32, %c0_33], %62 {strides = array<i32>} : memref<8x2x128xf32, #tpu.memory_space<vmem>>, vector<1x2x128xf32>,
    %63 = vector.extract_strided_slice %50 {offsets = [6, 0], sizes = [2, 128], strides = [1, 1]} : vector<16x128xf32> to vector<2x128xf32>
    %c3_34 = arith.constant 3 : index
    %c0_35 = arith.constant 0 : index
    %c0_36 = arith.constant 0 : index
    %64 = vector.load %arg4[%c3_34, %c0_35, %c0_36] : memref<8x2x128xf32, #tpu.memory_space<vmem>>, vector<1x2x128xf32>
    %65 = vector.shape_cast %64 : vector<1x2x128xf32> to vector<2x128xf32>
    %66 = vector.shape_cast %63 : vector<2x128xf32> to vector<1x2x128xf32>
    tpu.vector_store %arg4[%c3_34, %c0_35, %c0_36], %66 {strides = array<i32>} : memref<8x2x128xf32, #tpu.memory_space<vmem>>, vector<1x2x128xf32>,
    %67 = vector.extract_strided_slice %50 {offsets = [8, 0], sizes = [2, 128], strides = [1, 1]} : vector<16x128xf32> to vector<2x128xf32>
    %c4_37 = arith.constant 4 : index
    %c0_38 = arith.constant 0 : index
    %c0_39 = arith.constant 0 : index
    %68 = vector.load %arg4[%c4_37, %c0_38, %c0_39] : memref<8x2x128xf32, #tpu.memory_space<vmem>>, vector<1x2x128xf32>
    %69 = vector.shape_cast %68 : vector<1x2x128xf32> to vector<2x128xf32>
    %70 = vector.shape_cast %67 : vector<2x128xf32> to vector<1x2x128xf32>
    tpu.vector_store %arg4[%c4_37, %c0_38, %c0_39], %70 {strides = array<i32>} : memref<8x2x128xf32, #tpu.memory_space<vmem>>, vector<1x2x128xf32>,
    %71 = vector.extract_strided_slice %50 {offsets = [10, 0], sizes = [2, 128], strides = [1, 1]} : vector<16x128xf32> to vector<2x128xf32>
    %c5 = arith.constant 5 : index
    %c0_40 = arith.constant 0 : index
    %c0_41 = arith.constant 0 : index
    %72 = vector.load %arg4[%c5, %c0_40, %c0_41] : memref<8x2x128xf32, #tpu.memory_space<vmem>>, vector<1x2x128xf32>
    %73 = vector.shape_cast %72 : vector<1x2x128xf32> to vector<2x128xf32>
    %74 = vector.shape_cast %71 : vector<2x128xf32> to vector<1x2x128xf32>
    tpu.vector_store %arg4[%c5, %c0_40, %c0_41], %74 {strides = array<i32>} : memref<8x2x128xf32, #tpu.memory_space<vmem>>, vector<1x2x128xf32>,
    %75 = vector.extract_strided_slice %50 {offsets = [12, 0], sizes = [2, 128], strides = [1, 1]} : vector<16x128xf32> to vector<2x128xf32>
    %c6 = arith.constant 6 : index
    %c0_42 = arith.constant 0 : index
    %c0_43 = arith.constant 0 : index
    %76 = vector.load %arg4[%c6, %c0_42, %c0_43] : memref<8x2x128xf32, #tpu.memory_space<vmem>>, vector<1x2x128xf32>
    %77 = vector.shape_cast %76 : vector<1x2x128xf32> to vector<2x128xf32>
    %78 = vector.shape_cast %75 : vector<2x128xf32> to vector<1x2x128xf32>
    tpu.vector_store %arg4[%c6, %c0_42, %c0_43], %78 {strides = array<i32>} : memref<8x2x128xf32, #tpu.memory_space<vmem>>, vector<1x2x128xf32>,
    %79 = vector.extract_strided_slice %50 {offsets = [14, 0], sizes = [2, 128], strides = [1, 1]} : vector<16x128xf32> to vector<2x128xf32>
    %c7 = arith.constant 7 : index
    %c0_44 = arith.constant 0 : index
    %c0_45 = arith.constant 0 : index
    %80 = vector.load %arg4[%c7, %c0_44, %c0_45] : memref<8x2x128xf32, #tpu.memory_space<vmem>>, vector<1x2x128xf32>
    %81 = vector.shape_cast %80 : vector<1x2x128xf32> to vector<2x128xf32>
    %82 = vector.shape_cast %79 : vector<2x128xf32> to vector<1x2x128xf32>
    tpu.vector_store %arg4[%c7, %c0_44, %c0_45], %82 {strides = array<i32>} : memref<8x2x128xf32, #tpu.memory_space<vmem>>, vector<1x2x128xf32>,
    %c176 = arith.constant 176 : index
    %c0_46 = arith.constant 0 : index
    %83 = vector.load %arg1[%c176, %c0_46] : memref<304x256xbf16, #tpu.memory_space<vmem>>, vector<64x256xbf16>
    %c240 = arith.constant 240 : index
    %c0_47 = arith.constant 0 : index
    %84 = vector.load %arg1[%c240, %c0_47] : memref<304x256xbf16, #tpu.memory_space<vmem>>, vector<32x128xbf16>
    %c272 = arith.constant 272 : index
    %c0_48 = arith.constant 0 : index
    %85 = vector.load %arg1[%c272, %c0_48] : memref<304x256xbf16, #tpu.memory_space<vmem>>, vector<32x128xbf16>
    %cst_49 = arith.constant 0.000000e+00 : f32
    %86 = vector.broadcast %cst_49 : f32 to vector<2x32xf32>
    %cst_50 = arith.constant 0.000000e+00 : f32
    %87 = vector.broadcast %cst_50 : f32 to vector<2x32xf32>
    %cst_51 = arith.constant 0.000000e+00 : f32
    %88 = vector.broadcast %cst_51 : f32 to vector<2x32xf32>
    %cst_52 = arith.constant 0.000000e+00 : f32
    %89 = vector.broadcast %cst_52 : f32 to vector<2x32xf32>
    %90 = tpu.concatenate %86, %88 in 1 : vector<2x32xf32>, vector<2x32xf32> -> vector<2x64xf32>
    %91 = arith.truncf %90 : vector<2x64xf32> to vector<2x64xbf16>
    %cst_53 = arith.constant dense<0.000000e+00> : vector<2x256xf32>
    %92 = tpu.matmul %91, %83, %cst_53 {dimension_numbers = #tpu.dot_dimension_numbers<[1], [0], [0], [1], [0, 0, 1, 1], [], []>} : vector<2x64xbf16>, vector<64x256xbf16>, vector<2x256xf32> -> vector<2x256xf32>
    %c0_54 = arith.constant 0 : index
    %c0_55 = arith.constant 0 : index
    %c0_56 = arith.constant 0 : index
    %93 = vector.load %arg4[%c0_54, %c0_55, %c0_56] : memref<8x2x128xf32, #tpu.memory_space<vmem>>, vector<1x2x128xf32>
    %94 = vector.shape_cast %93 : vector<1x2x128xf32> to vector<2x128xf32>
    %95 = vector.extract_strided_slice %92 {offsets = [0, 0], sizes = [2, 128], strides = [1, 1]} : vector<2x256xf32> to vector<2x128xf32>
    %96 = arith.addf %94, %95 : vector<2x128xf32>
    %97 = vector.extract_strided_slice %96 {offsets = [0, 0], sizes = [2, 96], strides = [1, 1]} : vector<2x128xf32> to vector<2x96xf32>
    %98 = arith.negf %97 : vector<2x96xf32>
    %99 = math.exp %98 : vector<2x96xf32>
    %cst_57 = arith.constant 1.000000e+00 : f32
    %100 = vector.broadcast %cst_57 : f32 to vector<2x96xf32>
    %101 = arith.addf %100, %99 : vector<2x96xf32>
    %102 = arith.divf %100, %101 : vector<2x96xf32>
    %103 = vector.extract_strided_slice %102 {offsets = [0, 0], sizes = [2, 32], strides = [1, 1]} : vector<2x96xf32> to vector<2x32xf32>
    %104 = vector.extract_strided_slice %102 {offsets = [0, 32], sizes = [2, 32], strides = [1, 1]} : vector<2x96xf32> to vector<2x32xf32>
    %105 = vector.extract_strided_slice %102 {offsets = [0, 64], sizes = [2, 32], strides = [1, 1]} : vector<2x96xf32> to vector<2x32xf32>
    %106 = vector.extract_strided_slice %96 {offsets = [0, 96], sizes = [2, 32], strides = [1, 1]} : vector<2x128xf32> to vector<2x32xf32>
    %107 = math.tanh %106 : vector<2x32xf32>
    %108 = arith.mulf %104, %87 : vector<2x32xf32>
    %109 = arith.mulf %103, %107 : vector<2x32xf32>
    %110 = arith.addf %108, %109 : vector<2x32xf32>
    %111 = math.tanh %110 : vector<2x32xf32>
    %112 = arith.mulf %105, %111 : vector<2x32xf32>
    %113 = arith.truncf %112 : vector<2x32xf32> to vector<2x32xbf16>
    %cst_58 = arith.constant dense<0.000000e+00> : vector<2x128xf32>
    %114 = tpu.matmul %113, %84, %cst_58 {dimension_numbers = #tpu.dot_dimension_numbers<[1], [0], [0], [1], [0, 0, 1, 1], [], []>} : vector<2x32xbf16>, vector<32x128xbf16>, vector<2x128xf32> -> vector<2x128xf32>
    %115 = vector.extract_strided_slice %92 {offsets = [0, 128], sizes = [2, 128], strides = [1, 1]} : vector<2x256xf32> to vector<2x128xf32>
    %116 = arith.addf %114, %115 : vector<2x128xf32>
    %117 = vector.broadcast %3 : vector<1x128xf32> to vector<2x128xf32>
    %118 = arith.addf %116, %117 : vector<2x128xf32>
    %119 = vector.extract_strided_slice %118 {offsets = [0, 0], sizes = [2, 96], strides = [1, 1]} : vector<2x128xf32> to vector<2x96xf32>
    %120 = arith.negf %119 : vector<2x96xf32>
    %121 = math.exp %120 : vector<2x96xf32>
    %cst_59 = arith.constant 1.000000e+00 : f32
    %122 = vector.broadcast %cst_59 : f32 to vector<2x96xf32>
    %123 = arith.addf %122, %121 : vector<2x96xf32>
    %124 = arith.divf %122, %123 : vector<2x96xf32>
    %125 = vector.extract_strided_slice %124 {offsets = [0, 0], sizes = [2, 32], strides = [1, 1]} : vector<2x96xf32> to vector<2x32xf32>
    %126 = vector.extract_strided_slice %124 {offsets = [0, 32], sizes = [2, 32], strides = [1, 1]} : vector<2x96xf32> to vector<2x32xf32>
    %127 = vector.extract_strided_slice %124 {offsets = [0, 64], sizes = [2, 32], strides = [1, 1]} : vector<2x96xf32> to vector<2x32xf32>
    %128 = vector.extract_strided_slice %118 {offsets = [0, 96], sizes = [2, 32], strides = [1, 1]} : vector<2x128xf32> to vector<2x32xf32>
    %129 = math.tanh %128 : vector<2x32xf32>
    %130 = arith.mulf %126, %89 : vector<2x32xf32>
    %131 = arith.mulf %125, %129 : vector<2x32xf32>
    %132 = arith.addf %130, %131 : vector<2x32xf32>
    %133 = math.tanh %132 : vector<2x32xf32>
    %134 = arith.mulf %127, %133 : vector<2x32xf32>
    %135 = tpu.concatenate %112, %134 in 1 : vector<2x32xf32>, vector<2x32xf32> -> vector<2x64xf32>
    %136 = arith.truncf %135 : vector<2x64xf32> to vector<2x64xbf16>
    %cst_60 = arith.constant dense<0.000000e+00> : vector<2x256xf32>
    %137 = tpu.matmul %136, %83, %cst_60 {dimension_numbers = #tpu.dot_dimension_numbers<[1], [0], [0], [1], [0, 0, 1, 1], [], []>} : vector<2x64xbf16>, vector<64x256xbf16>, vector<2x256xf32> -> vector<2x256xf32>
    %c1_61 = arith.constant 1 : index
    %c0_62 = arith.constant 0 : index
    %c0_63 = arith.constant 0 : index
    %138 = vector.load %arg4[%c1_61, %c0_62, %c0_63] : memref<8x2x128xf32, #tpu.memory_space<vmem>>, vector<1x2x128xf32>
    %139 = vector.shape_cast %138 : vector<1x2x128xf32> to vector<2x128xf32>
    %140 = vector.extract_strided_slice %137 {offsets = [0, 0], sizes = [2, 128], strides = [1, 1]} : vector<2x256xf32> to vector<2x128xf32>
    %141 = arith.addf %139, %140 : vector<2x128xf32>
    %142 = vector.extract_strided_slice %141 {offsets = [0, 0], sizes = [2, 96], strides = [1, 1]} : vector<2x128xf32> to vector<2x96xf32>
    %143 = arith.negf %142 : vector<2x96xf32>
    %144 = math.exp %143 : vector<2x96xf32>
    %cst_64 = arith.constant 1.000000e+00 : f32
    %145 = vector.broadcast %cst_64 : f32 to vector<2x96xf32>
    %146 = arith.addf %145, %144 : vector<2x96xf32>
    %147 = arith.divf %145, %146 : vector<2x96xf32>
    %148 = vector.extract_strided_slice %147 {offsets = [0, 0], sizes = [2, 32], strides = [1, 1]} : vector<2x96xf32> to vector<2x32xf32>
    %149 = vector.extract_strided_slice %147 {offsets = [0, 32], sizes = [2, 32], strides = [1, 1]} : vector<2x96xf32> to vector<2x32xf32>
    %150 = vector.extract_strided_slice %147 {offsets = [0, 64], sizes = [2, 32], strides = [1, 1]} : vector<2x96xf32> to vector<2x32xf32>
    %151 = vector.extract_strided_slice %141 {offsets = [0, 96], sizes = [2, 32], strides = [1, 1]} : vector<2x128xf32> to vector<2x32xf32>
    %152 = math.tanh %151 : vector<2x32xf32>
    %153 = arith.mulf %149, %110 : vector<2x32xf32>
    %154 = arith.mulf %148, %152 : vector<2x32xf32>
    %155 = arith.addf %153, %154 : vector<2x32xf32>
    %156 = math.tanh %155 : vector<2x32xf32>
    %157 = arith.mulf %150, %156 : vector<2x32xf32>
    %158 = arith.truncf %157 : vector<2x32xf32> to vector<2x32xbf16>
    %cst_65 = arith.constant dense<0.000000e+00> : vector<2x128xf32>
    %159 = tpu.matmul %158, %84, %cst_65 {dimension_numbers = #tpu.dot_dimension_numbers<[1], [0], [0], [1], [0, 0, 1, 1], [], []>} : vector<2x32xbf16>, vector<32x128xbf16>, vector<2x128xf32> -> vector<2x128xf32>
    %160 = vector.extract_strided_slice %137 {offsets = [0, 128], sizes = [2, 128], strides = [1, 1]} : vector<2x256xf32> to vector<2x128xf32>
    %161 = arith.addf %159, %160 : vector<2x128xf32>
    %162 = vector.broadcast %3 : vector<1x128xf32> to vector<2x128xf32>
    %163 = arith.addf %161, %162 : vector<2x128xf32>
    %164 = vector.extract_strided_slice %163 {offsets = [0, 0], sizes = [2, 96], strides = [1, 1]} : vector<2x128xf32> to vector<2x96xf32>
    %165 = arith.negf %164 : vector<2x96xf32>
    %166 = math.exp %165 : vector<2x96xf32>
    %cst_66 = arith.constant 1.000000e+00 : f32
    %167 = vector.broadcast %cst_66 : f32 to vector<2x96xf32>
    %168 = arith.addf %167, %166 : vector<2x96xf32>
    %169 = arith.divf %167, %168 : vector<2x96xf32>
    %170 = vector.extract_strided_slice %169 {offsets = [0, 0], sizes = [2, 32], strides = [1, 1]} : vector<2x96xf32> to vector<2x32xf32>
    %171 = vector.extract_strided_slice %169 {offsets = [0, 32], sizes = [2, 32], strides = [1, 1]} : vector<2x96xf32> to vector<2x32xf32>
    %172 = vector.extract_strided_slice %169 {offsets = [0, 64], sizes = [2, 32], strides = [1, 1]} : vector<2x96xf32> to vector<2x32xf32>
    %173 = vector.extract_strided_slice %163 {offsets = [0, 96], sizes = [2, 32], strides = [1, 1]} : vector<2x128xf32> to vector<2x32xf32>
    %174 = math.tanh %173 : vector<2x32xf32>
    %175 = arith.mulf %171, %132 : vector<2x32xf32>
    %176 = arith.mulf %170, %174 : vector<2x32xf32>
    %177 = arith.addf %175, %176 : vector<2x32xf32>
    %178 = math.tanh %177 : vector<2x32xf32>
    %179 = arith.mulf %172, %178 : vector<2x32xf32>
    %180 = tpu.concatenate %157, %179 in 1 : vector<2x32xf32>, vector<2x32xf32> -> vector<2x64xf32>
    %181 = arith.truncf %180 : vector<2x64xf32> to vector<2x64xbf16>
    %cst_67 = arith.constant dense<0.000000e+00> : vector<2x256xf32>
    %182 = tpu.matmul %181, %83, %cst_67 {dimension_numbers = #tpu.dot_dimension_numbers<[1], [0], [0], [1], [0, 0, 1, 1], [], []>} : vector<2x64xbf16>, vector<64x256xbf16>, vector<2x256xf32> -> vector<2x256xf32>
    %c2_68 = arith.constant 2 : index
    %c0_69 = arith.constant 0 : index
    %c0_70 = arith.constant 0 : index
    %183 = vector.load %arg4[%c2_68, %c0_69, %c0_70] : memref<8x2x128xf32, #tpu.memory_space<vmem>>, vector<1x2x128xf32>
    %184 = vector.shape_cast %183 : vector<1x2x128xf32> to vector<2x128xf32>
    %185 = vector.extract_strided_slice %182 {offsets = [0, 0], sizes = [2, 128], strides = [1, 1]} : vector<2x256xf32> to vector<2x128xf32>
    %186 = arith.addf %184, %185 : vector<2x128xf32>
    %187 = vector.extract_strided_slice %186 {offsets = [0, 0], sizes = [2, 96], strides = [1, 1]} : vector<2x128xf32> to vector<2x96xf32>
    %188 = arith.negf %187 : vector<2x96xf32>
    %189 = math.exp %188 : vector<2x96xf32>
    %cst_71 = arith.constant 1.000000e+00 : f32
    %190 = vector.broadcast %cst_71 : f32 to vector<2x96xf32>
    %191 = arith.addf %190, %189 : vector<2x96xf32>
    %192 = arith.divf %190, %191 : vector<2x96xf32>
    %193 = vector.extract_strided_slice %192 {offsets = [0, 0], sizes = [2, 32], strides = [1, 1]} : vector<2x96xf32> to vector<2x32xf32>
    %194 = vector.extract_strided_slice %192 {offsets = [0, 32], sizes = [2, 32], strides = [1, 1]} : vector<2x96xf32> to vector<2x32xf32>
    %195 = vector.extract_strided_slice %192 {offsets = [0, 64], sizes = [2, 32], strides = [1, 1]} : vector<2x96xf32> to vector<2x32xf32>
    %196 = vector.extract_strided_slice %186 {offsets = [0, 96], sizes = [2, 32], strides = [1, 1]} : vector<2x128xf32> to vector<2x32xf32>
    %197 = math.tanh %196 : vector<2x32xf32>
    %198 = arith.mulf %194, %155 : vector<2x32xf32>
    %199 = arith.mulf %193, %197 : vector<2x32xf32>
    %200 = arith.addf %198, %199 : vector<2x32xf32>
    %201 = math.tanh %200 : vector<2x32xf32>
    %202 = arith.mulf %195, %201 : vector<2x32xf32>
    %203 = arith.truncf %202 : vector<2x32xf32> to vector<2x32xbf16>
    %cst_72 = arith.constant dense<0.000000e+00> : vector<2x128xf32>
    %204 = tpu.matmul %203, %84, %cst_72 {dimension_numbers = #tpu.dot_dimension_numbers<[1], [0], [0], [1], [0, 0, 1, 1], [], []>} : vector<2x32xbf16>, vector<32x128xbf16>, vector<2x128xf32> -> vector<2x128xf32>
    %205 = vector.extract_strided_slice %182 {offsets = [0, 128], sizes = [2, 128], strides = [1, 1]} : vector<2x256xf32> to vector<2x128xf32>
    %206 = arith.addf %204, %205 : vector<2x128xf32>
    %207 = vector.broadcast %3 : vector<1x128xf32> to vector<2x128xf32>
    %208 = arith.addf %206, %207 : vector<2x128xf32>
    %209 = vector.extract_strided_slice %208 {offsets = [0, 0], sizes = [2, 96], strides = [1, 1]} : vector<2x128xf32> to vector<2x96xf32>
    %210 = arith.negf %209 : vector<2x96xf32>
    %211 = math.exp %210 : vector<2x96xf32>
    %cst_73 = arith.constant 1.000000e+00 : f32
    %212 = vector.broadcast %cst_73 : f32 to vector<2x96xf32>
    %213 = arith.addf %212, %211 : vector<2x96xf32>
    %214 = arith.divf %212, %213 : vector<2x96xf32>
    %215 = vector.extract_strided_slice %214 {offsets = [0, 0], sizes = [2, 32], strides = [1, 1]} : vector<2x96xf32> to vector<2x32xf32>
    %216 = vector.extract_strided_slice %214 {offsets = [0, 32], sizes = [2, 32], strides = [1, 1]} : vector<2x96xf32> to vector<2x32xf32>
    %217 = vector.extract_strided_slice %214 {offsets = [0, 64], sizes = [2, 32], strides = [1, 1]} : vector<2x96xf32> to vector<2x32xf32>
    %218 = vector.extract_strided_slice %208 {offsets = [0, 96], sizes = [2, 32], strides = [1, 1]} : vector<2x128xf32> to vector<2x32xf32>
    %219 = math.tanh %218 : vector<2x32xf32>
    %220 = arith.mulf %216, %177 : vector<2x32xf32>
    %221 = arith.mulf %215, %219 : vector<2x32xf32>
    %222 = arith.addf %220, %221 : vector<2x32xf32>
    %223 = math.tanh %222 : vector<2x32xf32>
    %224 = arith.mulf %217, %223 : vector<2x32xf32>
    %225 = tpu.concatenate %202, %224 in 1 : vector<2x32xf32>, vector<2x32xf32> -> vector<2x64xf32>
    %226 = arith.truncf %225 : vector<2x64xf32> to vector<2x64xbf16>
    %cst_74 = arith.constant dense<0.000000e+00> : vector<2x256xf32>
    %227 = tpu.matmul %226, %83, %cst_74 {dimension_numbers = #tpu.dot_dimension_numbers<[1], [0], [0], [1], [0, 0, 1, 1], [], []>} : vector<2x64xbf16>, vector<64x256xbf16>, vector<2x256xf32> -> vector<2x256xf32>
    %c3_75 = arith.constant 3 : index
    %c0_76 = arith.constant 0 : index
    %c0_77 = arith.constant 0 : index
    %228 = vector.load %arg4[%c3_75, %c0_76, %c0_77] : memref<8x2x128xf32, #tpu.memory_space<vmem>>, vector<1x2x128xf32>
    %229 = vector.shape_cast %228 : vector<1x2x128xf32> to vector<2x128xf32>
    %230 = vector.extract_strided_slice %227 {offsets = [0, 0], sizes = [2, 128], strides = [1, 1]} : vector<2x256xf32> to vector<2x128xf32>
    %231 = arith.addf %229, %230 : vector<2x128xf32>
    %232 = vector.extract_strided_slice %231 {offsets = [0, 0], sizes = [2, 96], strides = [1, 1]} : vector<2x128xf32> to vector<2x96xf32>
    %233 = arith.negf %232 : vector<2x96xf32>
    %234 = math.exp %233 : vector<2x96xf32>
    %cst_78 = arith.constant 1.000000e+00 : f32
    %235 = vector.broadcast %cst_78 : f32 to vector<2x96xf32>
    %236 = arith.addf %235, %234 : vector<2x96xf32>
    %237 = arith.divf %235, %236 : vector<2x96xf32>
    %238 = vector.extract_strided_slice %237 {offsets = [0, 0], sizes = [2, 32], strides = [1, 1]} : vector<2x96xf32> to vector<2x32xf32>
    %239 = vector.extract_strided_slice %237 {offsets = [0, 32], sizes = [2, 32], strides = [1, 1]} : vector<2x96xf32> to vector<2x32xf32>
    %240 = vector.extract_strided_slice %237 {offsets = [0, 64], sizes = [2, 32], strides = [1, 1]} : vector<2x96xf32> to vector<2x32xf32>
    %241 = vector.extract_strided_slice %231 {offsets = [0, 96], sizes = [2, 32], strides = [1, 1]} : vector<2x128xf32> to vector<2x32xf32>
    %242 = math.tanh %241 : vector<2x32xf32>
    %243 = arith.mulf %239, %200 : vector<2x32xf32>
    %244 = arith.mulf %238, %242 : vector<2x32xf32>
    %245 = arith.addf %243, %244 : vector<2x32xf32>
    %246 = math.tanh %245 : vector<2x32xf32>
    %247 = arith.mulf %240, %246 : vector<2x32xf32>
    %248 = arith.truncf %247 : vector<2x32xf32> to vector<2x32xbf16>
    %cst_79 = arith.constant dense<0.000000e+00> : vector<2x128xf32>
    %249 = tpu.matmul %248, %84, %cst_79 {dimension_numbers = #tpu.dot_dimension_numbers<[1], [0], [0], [1], [0, 0, 1, 1], [], []>} : vector<2x32xbf16>, vector<32x128xbf16>, vector<2x128xf32> -> vector<2x128xf32>
    %250 = vector.extract_strided_slice %227 {offsets = [0, 128], sizes = [2, 128], strides = [1, 1]} : vector<2x256xf32> to vector<2x128xf32>
    %251 = arith.addf %249, %250 : vector<2x128xf32>
    %252 = vector.broadcast %3 : vector<1x128xf32> to vector<2x128xf32>
    %253 = arith.addf %251, %252 : vector<2x128xf32>
    %254 = vector.extract_strided_slice %253 {offsets = [0, 0], sizes = [2, 96], strides = [1, 1]} : vector<2x128xf32> to vector<2x96xf32>
    %255 = arith.negf %254 : vector<2x96xf32>
    %256 = math.exp %255 : vector<2x96xf32>
    %cst_80 = arith.constant 1.000000e+00 : f32
    %257 = vector.broadcast %cst_80 : f32 to vector<2x96xf32>
    %258 = arith.addf %257, %256 : vector<2x96xf32>
    %259 = arith.divf %257, %258 : vector<2x96xf32>
    %260 = vector.extract_strided_slice %259 {offsets = [0, 0], sizes = [2, 32], strides = [1, 1]} : vector<2x96xf32> to vector<2x32xf32>
    %261 = vector.extract_strided_slice %259 {offsets = [0, 32], sizes = [2, 32], strides = [1, 1]} : vector<2x96xf32> to vector<2x32xf32>
    %262 = vector.extract_strided_slice %259 {offsets = [0, 64], sizes = [2, 32], strides = [1, 1]} : vector<2x96xf32> to vector<2x32xf32>
    %263 = vector.extract_strided_slice %253 {offsets = [0, 96], sizes = [2, 32], strides = [1, 1]} : vector<2x128xf32> to vector<2x32xf32>
    %264 = math.tanh %263 : vector<2x32xf32>
    %265 = arith.mulf %261, %222 : vector<2x32xf32>
    %266 = arith.mulf %260, %264 : vector<2x32xf32>
    %267 = arith.addf %265, %266 : vector<2x32xf32>
    %268 = math.tanh %267 : vector<2x32xf32>
    %269 = arith.mulf %262, %268 : vector<2x32xf32>
    %270 = tpu.concatenate %247, %269 in 1 : vector<2x32xf32>, vector<2x32xf32> -> vector<2x64xf32>
    %271 = arith.truncf %270 : vector<2x64xf32> to vector<2x64xbf16>
    %cst_81 = arith.constant dense<0.000000e+00> : vector<2x256xf32>
    %272 = tpu.matmul %271, %83, %cst_81 {dimension_numbers = #tpu.dot_dimension_numbers<[1], [0], [0], [1], [0, 0, 1, 1], [], []>} : vector<2x64xbf16>, vector<64x256xbf16>, vector<2x256xf32> -> vector<2x256xf32>
    %c4_82 = arith.constant 4 : index
    %c0_83 = arith.constant 0 : index
    %c0_84 = arith.constant 0 : index
    %273 = vector.load %arg4[%c4_82, %c0_83, %c0_84] : memref<8x2x128xf32, #tpu.memory_space<vmem>>, vector<1x2x128xf32>
    %274 = vector.shape_cast %273 : vector<1x2x128xf32> to vector<2x128xf32>
    %275 = vector.extract_strided_slice %272 {offsets = [0, 0], sizes = [2, 128], strides = [1, 1]} : vector<2x256xf32> to vector<2x128xf32>
    %276 = arith.addf %274, %275 : vector<2x128xf32>
    %277 = vector.extract_strided_slice %276 {offsets = [0, 0], sizes = [2, 96], strides = [1, 1]} : vector<2x128xf32> to vector<2x96xf32>
    %278 = arith.negf %277 : vector<2x96xf32>
    %279 = math.exp %278 : vector<2x96xf32>
    %cst_85 = arith.constant 1.000000e+00 : f32
    %280 = vector.broadcast %cst_85 : f32 to vector<2x96xf32>
    %281 = arith.addf %280, %279 : vector<2x96xf32>
    %282 = arith.divf %280, %281 : vector<2x96xf32>
    %283 = vector.extract_strided_slice %282 {offsets = [0, 0], sizes = [2, 32], strides = [1, 1]} : vector<2x96xf32> to vector<2x32xf32>
    %284 = vector.extract_strided_slice %282 {offsets = [0, 32], sizes = [2, 32], strides = [1, 1]} : vector<2x96xf32> to vector<2x32xf32>
    %285 = vector.extract_strided_slice %282 {offsets = [0, 64], sizes = [2, 32], strides = [1, 1]} : vector<2x96xf32> to vector<2x32xf32>
    %286 = vector.extract_strided_slice %276 {offsets = [0, 96], sizes = [2, 32], strides = [1, 1]} : vector<2x128xf32> to vector<2x32xf32>
    %287 = math.tanh %286 : vector<2x32xf32>
    %288 = arith.mulf %284, %245 : vector<2x32xf32>
    %289 = arith.mulf %283, %287 : vector<2x32xf32>
    %290 = arith.addf %288, %289 : vector<2x32xf32>
    %291 = math.tanh %290 : vector<2x32xf32>
    %292 = arith.mulf %285, %291 : vector<2x32xf32>
    %293 = arith.truncf %292 : vector<2x32xf32> to vector<2x32xbf16>
    %cst_86 = arith.constant dense<0.000000e+00> : vector<2x128xf32>
    %294 = tpu.matmul %293, %84, %cst_86 {dimension_numbers = #tpu.dot_dimension_numbers<[1], [0], [0], [1], [0, 0, 1, 1], [], []>} : vector<2x32xbf16>, vector<32x128xbf16>, vector<2x128xf32> -> vector<2x128xf32>
    %295 = vector.extract_strided_slice %272 {offsets = [0, 128], sizes = [2, 128], strides = [1, 1]} : vector<2x256xf32> to vector<2x128xf32>
    %296 = arith.addf %294, %295 : vector<2x128xf32>
    %297 = vector.broadcast %3 : vector<1x128xf32> to vector<2x128xf32>
    %298 = arith.addf %296, %297 : vector<2x128xf32>
    %299 = vector.extract_strided_slice %298 {offsets = [0, 0], sizes = [2, 96], strides = [1, 1]} : vector<2x128xf32> to vector<2x96xf32>
    %300 = arith.negf %299 : vector<2x96xf32>
    %301 = math.exp %300 : vector<2x96xf32>
    %cst_87 = arith.constant 1.000000e+00 : f32
    %302 = vector.broadcast %cst_87 : f32 to vector<2x96xf32>
    %303 = arith.addf %302, %301 : vector<2x96xf32>
    %304 = arith.divf %302, %303 : vector<2x96xf32>
    %305 = vector.extract_strided_slice %304 {offsets = [0, 0], sizes = [2, 32], strides = [1, 1]} : vector<2x96xf32> to vector<2x32xf32>
    %306 = vector.extract_strided_slice %304 {offsets = [0, 32], sizes = [2, 32], strides = [1, 1]} : vector<2x96xf32> to vector<2x32xf32>
    %307 = vector.extract_strided_slice %304 {offsets = [0, 64], sizes = [2, 32], strides = [1, 1]} : vector<2x96xf32> to vector<2x32xf32>
    %308 = vector.extract_strided_slice %298 {offsets = [0, 96], sizes = [2, 32], strides = [1, 1]} : vector<2x128xf32> to vector<2x32xf32>
    %309 = math.tanh %308 : vector<2x32xf32>
    %310 = arith.mulf %306, %267 : vector<2x32xf32>
    %311 = arith.mulf %305, %309 : vector<2x32xf32>
    %312 = arith.addf %310, %311 : vector<2x32xf32>
    %313 = math.tanh %312 : vector<2x32xf32>
    %314 = arith.mulf %307, %313 : vector<2x32xf32>
    %315 = tpu.concatenate %292, %314 in 1 : vector<2x32xf32>, vector<2x32xf32> -> vector<2x64xf32>
    %316 = arith.truncf %315 : vector<2x64xf32> to vector<2x64xbf16>
    %cst_88 = arith.constant dense<0.000000e+00> : vector<2x256xf32>
    %317 = tpu.matmul %316, %83, %cst_88 {dimension_numbers = #tpu.dot_dimension_numbers<[1], [0], [0], [1], [0, 0, 1, 1], [], []>} : vector<2x64xbf16>, vector<64x256xbf16>, vector<2x256xf32> -> vector<2x256xf32>
    %c5_89 = arith.constant 5 : index
    %c0_90 = arith.constant 0 : index
    %c0_91 = arith.constant 0 : index
    %318 = vector.load %arg4[%c5_89, %c0_90, %c0_91] : memref<8x2x128xf32, #tpu.memory_space<vmem>>, vector<1x2x128xf32>
    %319 = vector.shape_cast %318 : vector<1x2x128xf32> to vector<2x128xf32>
    %320 = vector.extract_strided_slice %317 {offsets = [0, 0], sizes = [2, 128], strides = [1, 1]} : vector<2x256xf32> to vector<2x128xf32>
    %321 = arith.addf %319, %320 : vector<2x128xf32>
    %322 = vector.extract_strided_slice %321 {offsets = [0, 0], sizes = [2, 96], strides = [1, 1]} : vector<2x128xf32> to vector<2x96xf32>
    %323 = arith.negf %322 : vector<2x96xf32>
    %324 = math.exp %323 : vector<2x96xf32>
    %cst_92 = arith.constant 1.000000e+00 : f32
    %325 = vector.broadcast %cst_92 : f32 to vector<2x96xf32>
    %326 = arith.addf %325, %324 : vector<2x96xf32>
    %327 = arith.divf %325, %326 : vector<2x96xf32>
    %328 = vector.extract_strided_slice %327 {offsets = [0, 0], sizes = [2, 32], strides = [1, 1]} : vector<2x96xf32> to vector<2x32xf32>
    %329 = vector.extract_strided_slice %327 {offsets = [0, 32], sizes = [2, 32], strides = [1, 1]} : vector<2x96xf32> to vector<2x32xf32>
    %330 = vector.extract_strided_slice %327 {offsets = [0, 64], sizes = [2, 32], strides = [1, 1]} : vector<2x96xf32> to vector<2x32xf32>
    %331 = vector.extract_strided_slice %321 {offsets = [0, 96], sizes = [2, 32], strides = [1, 1]} : vector<2x128xf32> to vector<2x32xf32>
    %332 = math.tanh %331 : vector<2x32xf32>
    %333 = arith.mulf %329, %290 : vector<2x32xf32>
    %334 = arith.mulf %328, %332 : vector<2x32xf32>
    %335 = arith.addf %333, %334 : vector<2x32xf32>
    %336 = math.tanh %335 : vector<2x32xf32>
    %337 = arith.mulf %330, %336 : vector<2x32xf32>
    %338 = arith.truncf %337 : vector<2x32xf32> to vector<2x32xbf16>
    %cst_93 = arith.constant dense<0.000000e+00> : vector<2x128xf32>
    %339 = tpu.matmul %338, %84, %cst_93 {dimension_numbers = #tpu.dot_dimension_numbers<[1], [0], [0], [1], [0, 0, 1, 1], [], []>} : vector<2x32xbf16>, vector<32x128xbf16>, vector<2x128xf32> -> vector<2x128xf32>
    %340 = vector.extract_strided_slice %317 {offsets = [0, 128], sizes = [2, 128], strides = [1, 1]} : vector<2x256xf32> to vector<2x128xf32>
    %341 = arith.addf %339, %340 : vector<2x128xf32>
    %342 = vector.broadcast %3 : vector<1x128xf32> to vector<2x128xf32>
    %343 = arith.addf %341, %342 : vector<2x128xf32>
    %344 = vector.extract_strided_slice %343 {offsets = [0, 0], sizes = [2, 96], strides = [1, 1]} : vector<2x128xf32> to vector<2x96xf32>
    %345 = arith.negf %344 : vector<2x96xf32>
    %346 = math.exp %345 : vector<2x96xf32>
    %cst_94 = arith.constant 1.000000e+00 : f32
    %347 = vector.broadcast %cst_94 : f32 to vector<2x96xf32>
    %348 = arith.addf %347, %346 : vector<2x96xf32>
    %349 = arith.divf %347, %348 : vector<2x96xf32>
    %350 = vector.extract_strided_slice %349 {offsets = [0, 0], sizes = [2, 32], strides = [1, 1]} : vector<2x96xf32> to vector<2x32xf32>
    %351 = vector.extract_strided_slice %349 {offsets = [0, 32], sizes = [2, 32], strides = [1, 1]} : vector<2x96xf32> to vector<2x32xf32>
    %352 = vector.extract_strided_slice %349 {offsets = [0, 64], sizes = [2, 32], strides = [1, 1]} : vector<2x96xf32> to vector<2x32xf32>
    %353 = vector.extract_strided_slice %343 {offsets = [0, 96], sizes = [2, 32], strides = [1, 1]} : vector<2x128xf32> to vector<2x32xf32>
    %354 = math.tanh %353 : vector<2x32xf32>
    %355 = arith.mulf %351, %312 : vector<2x32xf32>
    %356 = arith.mulf %350, %354 : vector<2x32xf32>
    %357 = arith.addf %355, %356 : vector<2x32xf32>
    %358 = math.tanh %357 : vector<2x32xf32>
    %359 = arith.mulf %352, %358 : vector<2x32xf32>
    %360 = tpu.concatenate %337, %359 in 1 : vector<2x32xf32>, vector<2x32xf32> -> vector<2x64xf32>
    %361 = arith.truncf %360 : vector<2x64xf32> to vector<2x64xbf16>
    %cst_95 = arith.constant dense<0.000000e+00> : vector<2x256xf32>
    %362 = tpu.matmul %361, %83, %cst_95 {dimension_numbers = #tpu.dot_dimension_numbers<[1], [0], [0], [1], [0, 0, 1, 1], [], []>} : vector<2x64xbf16>, vector<64x256xbf16>, vector<2x256xf32> -> vector<2x256xf32>
    %c6_96 = arith.constant 6 : index
    %c0_97 = arith.constant 0 : index
    %c0_98 = arith.constant 0 : index
    %363 = vector.load %arg4[%c6_96, %c0_97, %c0_98] : memref<8x2x128xf32, #tpu.memory_space<vmem>>, vector<1x2x128xf32>
    %364 = vector.shape_cast %363 : vector<1x2x128xf32> to vector<2x128xf32>
    %365 = vector.extract_strided_slice %362 {offsets = [0, 0], sizes = [2, 128], strides = [1, 1]} : vector<2x256xf32> to vector<2x128xf32>
    %366 = arith.addf %364, %365 : vector<2x128xf32>
    %367 = vector.extract_strided_slice %366 {offsets = [0, 0], sizes = [2, 96], strides = [1, 1]} : vector<2x128xf32> to vector<2x96xf32>
    %368 = arith.negf %367 : vector<2x96xf32>
    %369 = math.exp %368 : vector<2x96xf32>
    %cst_99 = arith.constant 1.000000e+00 : f32
    %370 = vector.broadcast %cst_99 : f32 to vector<2x96xf32>
    %371 = arith.addf %370, %369 : vector<2x96xf32>
    %372 = arith.divf %370, %371 : vector<2x96xf32>
    %373 = vector.extract_strided_slice %372 {offsets = [0, 0], sizes = [2, 32], strides = [1, 1]} : vector<2x96xf32> to vector<2x32xf32>
    %374 = vector.extract_strided_slice %372 {offsets = [0, 32], sizes = [2, 32], strides = [1, 1]} : vector<2x96xf32> to vector<2x32xf32>
    %375 = vector.extract_strided_slice %372 {offsets = [0, 64], sizes = [2, 32], strides = [1, 1]} : vector<2x96xf32> to vector<2x32xf32>
    %376 = vector.extract_strided_slice %366 {offsets = [0, 96], sizes = [2, 32], strides = [1, 1]} : vector<2x128xf32> to vector<2x32xf32>
    %377 = math.tanh %376 : vector<2x32xf32>
    %378 = arith.mulf %374, %335 : vector<2x32xf32>
    %379 = arith.mulf %373, %377 : vector<2x32xf32>
    %380 = arith.addf %378, %379 : vector<2x32xf32>
    %381 = math.tanh %380 : vector<2x32xf32>
    %382 = arith.mulf %375, %381 : vector<2x32xf32>
    %383 = arith.truncf %382 : vector<2x32xf32> to vector<2x32xbf16>
    %cst_100 = arith.constant dense<0.000000e+00> : vector<2x128xf32>
    %384 = tpu.matmul %383, %84, %cst_100 {dimension_numbers = #tpu.dot_dimension_numbers<[1], [0], [0], [1], [0, 0, 1, 1], [], []>} : vector<2x32xbf16>, vector<32x128xbf16>, vector<2x128xf32> -> vector<2x128xf32>
    %385 = vector.extract_strided_slice %362 {offsets = [0, 128], sizes = [2, 128], strides = [1, 1]} : vector<2x256xf32> to vector<2x128xf32>
    %386 = arith.addf %384, %385 : vector<2x128xf32>
    %387 = vector.broadcast %3 : vector<1x128xf32> to vector<2x128xf32>
    %388 = arith.addf %386, %387 : vector<2x128xf32>
    %389 = vector.extract_strided_slice %388 {offsets = [0, 0], sizes = [2, 96], strides = [1, 1]} : vector<2x128xf32> to vector<2x96xf32>
    %390 = arith.negf %389 : vector<2x96xf32>
    %391 = math.exp %390 : vector<2x96xf32>
    %cst_101 = arith.constant 1.000000e+00 : f32
    %392 = vector.broadcast %cst_101 : f32 to vector<2x96xf32>
    %393 = arith.addf %392, %391 : vector<2x96xf32>
    %394 = arith.divf %392, %393 : vector<2x96xf32>
    %395 = vector.extract_strided_slice %394 {offsets = [0, 0], sizes = [2, 32], strides = [1, 1]} : vector<2x96xf32> to vector<2x32xf32>
    %396 = vector.extract_strided_slice %394 {offsets = [0, 32], sizes = [2, 32], strides = [1, 1]} : vector<2x96xf32> to vector<2x32xf32>
    %397 = vector.extract_strided_slice %394 {offsets = [0, 64], sizes = [2, 32], strides = [1, 1]} : vector<2x96xf32> to vector<2x32xf32>
    %398 = vector.extract_strided_slice %388 {offsets = [0, 96], sizes = [2, 32], strides = [1, 1]} : vector<2x128xf32> to vector<2x32xf32>
    %399 = math.tanh %398 : vector<2x32xf32>
    %400 = arith.mulf %396, %357 : vector<2x32xf32>
    %401 = arith.mulf %395, %399 : vector<2x32xf32>
    %402 = arith.addf %400, %401 : vector<2x32xf32>
    %403 = math.tanh %402 : vector<2x32xf32>
    %404 = arith.mulf %397, %403 : vector<2x32xf32>
    %405 = tpu.concatenate %382, %404 in 1 : vector<2x32xf32>, vector<2x32xf32> -> vector<2x64xf32>
    %406 = arith.truncf %405 : vector<2x64xf32> to vector<2x64xbf16>
    %cst_102 = arith.constant dense<0.000000e+00> : vector<2x256xf32>
    %407 = tpu.matmul %406, %83, %cst_102 {dimension_numbers = #tpu.dot_dimension_numbers<[1], [0], [0], [1], [0, 0, 1, 1], [], []>} : vector<2x64xbf16>, vector<64x256xbf16>, vector<2x256xf32> -> vector<2x256xf32>
    %c7_103 = arith.constant 7 : index
    %c0_104 = arith.constant 0 : index
    %c0_105 = arith.constant 0 : index
    %408 = vector.load %arg4[%c7_103, %c0_104, %c0_105] : memref<8x2x128xf32, #tpu.memory_space<vmem>>, vector<1x2x128xf32>
    %409 = vector.shape_cast %408 : vector<1x2x128xf32> to vector<2x128xf32>
    %410 = vector.extract_strided_slice %407 {offsets = [0, 0], sizes = [2, 128], strides = [1, 1]} : vector<2x256xf32> to vector<2x128xf32>
    %411 = arith.addf %409, %410 : vector<2x128xf32>
    %412 = vector.extract_strided_slice %411 {offsets = [0, 0], sizes = [2, 96], strides = [1, 1]} : vector<2x128xf32> to vector<2x96xf32>
    %413 = arith.negf %412 : vector<2x96xf32>
    %414 = math.exp %413 : vector<2x96xf32>
    %cst_106 = arith.constant 1.000000e+00 : f32
    %415 = vector.broadcast %cst_106 : f32 to vector<2x96xf32>
    %416 = arith.addf %415, %414 : vector<2x96xf32>
    %417 = arith.divf %415, %416 : vector<2x96xf32>
    %418 = vector.extract_strided_slice %417 {offsets = [0, 0], sizes = [2, 32], strides = [1, 1]} : vector<2x96xf32> to vector<2x32xf32>
    %419 = vector.extract_strided_slice %417 {offsets = [0, 32], sizes = [2, 32], strides = [1, 1]} : vector<2x96xf32> to vector<2x32xf32>
    %420 = vector.extract_strided_slice %417 {offsets = [0, 64], sizes = [2, 32], strides = [1, 1]} : vector<2x96xf32> to vector<2x32xf32>
    %421 = vector.extract_strided_slice %411 {offsets = [0, 96], sizes = [2, 32], strides = [1, 1]} : vector<2x128xf32> to vector<2x32xf32>
    %422 = math.tanh %421 : vector<2x32xf32>
    %423 = arith.mulf %419, %380 : vector<2x32xf32>
    %424 = arith.mulf %418, %422 : vector<2x32xf32>
    %425 = arith.addf %423, %424 : vector<2x32xf32>
    %426 = math.tanh %425 : vector<2x32xf32>
    %427 = arith.mulf %420, %426 : vector<2x32xf32>
    %428 = arith.truncf %427 : vector<2x32xf32> to vector<2x32xbf16>
    %cst_107 = arith.constant dense<0.000000e+00> : vector<2x128xf32>
    %429 = tpu.matmul %428, %84, %cst_107 {dimension_numbers = #tpu.dot_dimension_numbers<[1], [0], [0], [1], [0, 0, 1, 1], [], []>} : vector<2x32xbf16>, vector<32x128xbf16>, vector<2x128xf32> -> vector<2x128xf32>
    %430 = vector.extract_strided_slice %407 {offsets = [0, 128], sizes = [2, 128], strides = [1, 1]} : vector<2x256xf32> to vector<2x128xf32>
    %431 = arith.addf %429, %430 : vector<2x128xf32>
    %432 = vector.broadcast %3 : vector<1x128xf32> to vector<2x128xf32>
    %433 = arith.addf %431, %432 : vector<2x128xf32>
    %434 = vector.extract_strided_slice %433 {offsets = [0, 0], sizes = [2, 96], strides = [1, 1]} : vector<2x128xf32> to vector<2x96xf32>
    %435 = arith.negf %434 : vector<2x96xf32>
    %436 = math.exp %435 : vector<2x96xf32>
    %cst_108 = arith.constant 1.000000e+00 : f32
    %437 = vector.broadcast %cst_108 : f32 to vector<2x96xf32>
    %438 = arith.addf %437, %436 : vector<2x96xf32>
    %439 = arith.divf %437, %438 : vector<2x96xf32>
    %440 = vector.extract_strided_slice %439 {offsets = [0, 0], sizes = [2, 32], strides = [1, 1]} : vector<2x96xf32> to vector<2x32xf32>
    %441 = vector.extract_strided_slice %439 {offsets = [0, 32], sizes = [2, 32], strides = [1, 1]} : vector<2x96xf32> to vector<2x32xf32>
    %442 = vector.extract_strided_slice %439 {offsets = [0, 64], sizes = [2, 32], strides = [1, 1]} : vector<2x96xf32> to vector<2x32xf32>
    %443 = vector.extract_strided_slice %433 {offsets = [0, 96], sizes = [2, 32], strides = [1, 1]} : vector<2x128xf32> to vector<2x32xf32>
    %444 = math.tanh %443 : vector<2x32xf32>
    %445 = arith.mulf %441, %402 : vector<2x32xf32>
    %446 = arith.mulf %440, %444 : vector<2x32xf32>
    %447 = arith.addf %445, %446 : vector<2x32xf32>
    %448 = math.tanh %447 : vector<2x32xf32>
    %449 = arith.mulf %442, %448 : vector<2x32xf32>
    %450 = arith.truncf %449 : vector<2x32xf32> to vector<2x32xbf16>
    %cst_109 = arith.constant dense<0.000000e+00> : vector<2x128xf32>
    %451 = tpu.matmul %450, %85, %cst_109 {dimension_numbers = #tpu.dot_dimension_numbers<[1], [0], [0], [1], [0, 0, 1, 1], [], []>} : vector<2x32xbf16>, vector<32x128xbf16>, vector<2x128xf32> -> vector<2x128xf32>
    %452 = vector.broadcast %4 : vector<1x128xf32> to vector<2x128xf32>
    %453 = arith.addf %451, %452 : vector<2x128xf32>
    %c0_110 = arith.constant 0 : index
    %c0_111 = arith.constant 0 : index
    %454 = vector.load %arg3[%c0_110, %c0_111] : memref<2x128xf32, #tpu.memory_space<vmem>>, vector<2x128xf32>
    tpu.vector_store %arg3[%c0_110, %c0_111], %453 {strides = array<i32>} : memref<2x128xf32, #tpu.memory_space<vmem>>, vector<2x128xf32>,
    return
  }
}

</mosaic_0001>

<llo_original>
// kernel: forward.1
$region0: #{forward.1}
  #allocation0 [shape = 'u32[]', space=smem, size = 0x4, offset = 0x4, fixed_abs, tag = 'smem constant byte address 0x4 - core index']
  #allocation1 [shape = 'u32[144,128]{1,0:T(1,128)}', space=vmem, size = 0x12000, scoped, tag = 'internal scratch']
  #allocation2 [shape = 'f32[8,2,128]{2,1,0:T(2,128)}', space=vmem, size = 0x2000, scoped, tag = 'scratch operand']
  %s0 = inlined_call_operand.vmem [shape: s32[24,1], index: 0, kind: input, shape index: {}]
  %s1 = inlined_call_operand.vmem [shape: bf16[304,256], index: 1, kind: input, shape index: {}]
  %s2 = inlined_call_operand.vmem [shape: f32[5,128], index: 2, kind: input, shape index: {}]
  %s3 = inlined_call_operand.hbm [shape: f32[2,128], index: 3, kind: output, shape index: {}]
  %s4 = sld [smem:[#allocation0]]
  $region22: #{forward.1} parent=0
    _
  %s6 = ssub.s32 1, %s4
  %s7 = scalar_select 0, %s6, %s4
  $region1: #{forward.1} parent=0
    #allocation3 [shape = 'u8[1024]{0}', space=vmem, size = 0x400, scoped, tag = 'output window, operand 0, single buffered']
    #allocation4 [shape = 's32[1]{0}', space=sflag, size = 0x4, scoped, tag = 'scoped memory for forward.1']
    %8 = vsyncpa [#allocation4], 0
    // Predicated region
    $region2: #{forward.1} parent=1 // pred_check
      _
    $region3: #{forward.1} parent=1 // pred_check_branch
      %10 = sbr.rel (0) target = $region5
    $region4: #{forward.1} parent=1 // pred_region
      _
    $region5: #{forward.1} parent=1 // pred_fallthru
      _
    // Predicated region
    $region6: #{forward.1} parent=1 // pred_check
      _
    $region7: #{forward.1} parent=1 // pred_check_branch
      %12 = sbr.rel (0) target = $region9
    $region8: #{forward.1} parent=1 // pred_region
      _
    $region9: #{forward.1} parent=1 // pred_fallthru
      _
    // Predicated region
    $region10: #{forward.1} parent=1 // pred_check
      _
    $region11: #{forward.1} parent=1 // pred_check_branch
      %14 = sbr.rel (0) target = $region13
    $region12: #{forward.1} parent=1 // pred_region
      _
    $region13: #{forward.1} parent=1 // pred_fallthru
      _
    %v16 = vld [vmem:[%s2] sm:$0x1]
    %v17 = vld [vmem:[%s2 + $0x1] sm:$0x1]
    %v18 = vld [vmem:[%s2 + $0x2] sm:$0x1]
    %v19 = vld [vmem:[%s2 + $0x3] sm:$0x1]
    %v20 = vld [vmem:[%s2 + $0x4] sm:$0x1]
    %v21 = vld [vmem:[%s0] sm:$0xff]
    %v22 = vld [vmem:[%s0 + $0x8] sm:$0xff]
    %v23 = vld [vmem:[%s0 + $0x10] sm:$0xff]
    %v24 = vlaneseq
    %v25 = vand.u32 %v24, 127
    %26 = vset.pattern.permute.xlu0 0
    %27 = vperm.xlu0 %26, %v21
    %v28 = vpop.permute.xlu0 %27
    %29 = vset.pattern.permute.xlu0 0
    %30 = vperm.xlu0 %29, %v22
    %v31 = vpop.permute.xlu0 %30
    %32 = vset.pattern.permute.xlu0 0
    %33 = vperm.xlu0 %32, %v23
    %v34 = vpop.permute.xlu0 %33
    %vm35 = vcmp.eq.s32.totalorder %v28, %v25
    %vm36 = vcmp.eq.s32.totalorder %v31, %v25
    %vm37 = vcmp.eq.s32.totalorder %v34, %v25
    %v38 = vsel %vm35, 1, 0
    %v39 = vsel %vm36, 1, 0
    %v40 = vsel %vm37, 1, 0
    %v41 = vcvt.s32.f32 %v38
    %v42 = vcvt.s32.f32 %v39
    %v43 = vcvt.s32.f32 %v40
    %v44 = vpack.c.bf16 %v42, %v41
    %v45 = vpack.c.bf16 %v43, %v43
    %v46 = vld [vmem:[%s1] sm:$0xf]
    %v47 = vld [vmem:[%s1 + $0x8] sm:$0xf]
    %v48 = vld [vmem:[%s1 + $0x10] sm:$0xf]
    %v49 = vld [vmem:[%s1 + $0x18] sm:$0xf]
    %v50 = vld [vmem:[%s1 + $0x20] sm:$0xf]
    %v51 = vld [vmem:[%s1 + $0x28] sm:$0xf]
    %v52 = vld [vmem:[%s1 + $0x30] sm:$0x1]
    %v60 = vunpack.c.l.b16 %v46
    %v61 = vunpack.c.l.b16 %v47
    %v62 = vunpack.c.l.b16 %v48
    %v63 = vunpack.c.l.b16 %v49
    %v64 = vunpack.c.l.b16 %v50
    %v65 = vunpack.c.l.b16 %v51
    %v66 = vunpack.c.l.b16 %v52
    %v67 = vpack.c.b16 %v61, %v60
    %v68 = vpack.c.b16 %v63, %v62
    %v69 = vpack.c.b16 %v65, %v64
    %v70 = vpack.c.b16 %v66, %v66
    %vm74 = vcmask 408576
    %v76 = vsel %vm74, %v44, 0
    %v79 = vsel %vm74, %v45, 0
    %vm81 = vcmask 1040384
    %v83 = vsel %vm81, %v70, 0
    %85 = vmatprep.subr.bf16.mxu0 0
    %86 = vmatpush1.bf16.msra.mxu0 %v67
    %87 = vmatprep.subr.bf16.mxu0 0
    %88 = vmatpush1.bf16.msra.mxu0 %v68
    %89 = vmatprep.subr.bf16.mxu0 0
    %90 = vmatpush1.bf16.msra.mxu0 %v69
    %91 = vmatprep.subr.bf16.mxu0 0
    %92 = vmatpush1.bf16.msra.mxu0 %v83
    %93 = vmatprep.subr.bf16.mxu0 0
    %94 = vmatpush1.bf16.msra.mxu0 0
    %95 = vmatprep.subr.bf16.mxu0 0
    %96 = vmatpush1.bf16.msra.mxu0 0
    %97 = vmatprep.subr.bf16.mxu0 0
    %98 = vmatpush1.bf16.msra.mxu0 0
    %99 = vmatprep.subr.bf16.mxu0 0
    %100 = vmatpush1.bf16.msra.mxu0 0
    %101 = vmatprep.subr.bf16.mxu0 0
    %102 = vmatpush1.bf16.msra.mxu0 0
    %103 = vmatprep.subr.bf16.mxu0 0
    %104 = vmatpush1.bf16.msra.mxu0 0
    %105 = vmatprep.subr.bf16.mxu0 0
    %106 = vmatpush1.bf16.msra.mxu0 0
    %107 = vmatprep.subr.bf16.mxu0 0
    %108 = vmatpush1.bf16.msra.mxu0 0
    %109 = vmatprep.subr.bf16.mxu0 0
    %110 = vmatpush1.bf16.msra.mxu0 0
    %111 = vmatprep.subr.bf16.mxu0 0
    %112 = vmatpush1.bf16.msra.mxu0 0
    %113 = vmatprep.subr.bf16.mxu0 0
    %114 = vmatpush1.bf16.msra.mxu0 0
    %115 = vmatprep.subr.bf16.mxu0 0
    %116 = vmatpush1.bf16.msra.mxu0 0
    %117 = vmatprep.mubr.bf16.mxu0 0
    %118 = vmatmul.mubr.bf16.gmra.mrb[0].mxu0 %v76
    %v119 = vpop.f32.mrb[0].mxu0
    %v120 = vadd.f32 0.0, %v119
    %v121 = vpop.f32.mrb[0].mxu0
    %v122 = vpop.f32.mrb[0].mxu0
    %v123 = vadd.f32 0.0, %v122
    %v124 = vpop.f32.mrb[0].mxu0
    %125 = vmatprep.mubr.bf16.mxu0 0
    %126 = vmatmul.mubr.bf16.gmra.mrb[0].mxu0 %v79
    %v127 = vpop.f32.mrb[0].mxu0
    %v128 = vadd.f32 0.0, %v127
    %v129 = vpop.f32.mrb[0].mxu0
    %v130 = vpop.f32.mrb[0].mxu0
    %v131 = vpop.f32.mrb[0].mxu0
    %132 = vdwg.mxu0
    %v133 = vpack.c.bf16 %v123, %v120
    %v134 = vpack.c.bf16 %v128, %v128
    %v135 = vld [vmem:[%s1 + $0x40] sm:$0xf]
    %v136 = vld [vmem:[%s1 + $0x48] sm:$0xf]
    %v137 = vld [vmem:[%s1 + $0x50] sm:$0xf]
    %v138 = vld [vmem:[%s1 + $0x58] sm:$0xf]
    %vm141 = vcmask 1046528
    %v142 = vrot.slane %v133, 1
    %v143 = vrot.slane %v134, 1
    %v144 = vsel %vm141, %v142, %v143
    %v147 = vunpack.c.l.b16 %v137
    %v148 = vunpack.c.l.b16 %v138
    %v149 = vpack.c.b16 %v148, %v147
    %vm151 = vcmask 130048
    %v153 = vsel %vm151, %v144, 0
    %v156 = vsel %vm151, %v143, 0
    %158 = vmatprep.subr.bf16.mxu0 0
    %159 = vmatpush1.bf16.msra.mxu0 %v149
    %160 = vmatprep.subr.bf16.mxu0 0
    %161 = vmatpush1.bf16.msra.mxu0 0
    %162 = vmatprep.subr.bf16.mxu0 0
    %163 = vmatpush1.bf16.msra.mxu0 0
    %164 = vmatprep.subr.bf16.mxu0 0
    %165 = vmatpush1.bf16.msra.mxu0 0
    %166 = vmatprep.subr.bf16.mxu0 0
    %167 = vmatpush1.bf16.msra.mxu0 0
    %168 = vmatprep.subr.bf16.mxu0 0
    %169 = vmatpush1.bf16.msra.mxu0 0
    %170 = vmatprep.subr.bf16.mxu0 0
    %171 = vmatpush1.bf16.msra.mxu0 0
    %172 = vmatprep.subr.bf16.mxu0 0
    %173 = vmatpush1.bf16.msra.mxu0 0
    %174 = vmatprep.subr.bf16.mxu0 0
    %175 = vmatpush1.bf16.msra.mxu0 0
    %176 = vmatprep.subr.bf16.mxu0 0
    %177 = vmatpush1.bf16.msra.mxu0 0
    %178 = vmatprep.subr.bf16.mxu0 0
    %179 = vmatpush1.bf16.msra.mxu0 0
    %180 = vmatprep.subr.bf16.mxu0 0
    %181 = vmatpush1.bf16.msra.mxu0 0
    %182 = vmatprep.subr.bf16.mxu0 0
    %183 = vmatpush1.bf16.msra.mxu0 0
    %184 = vmatprep.subr.bf16.mxu0 0
    %185 = vmatpush1.bf16.msra.mxu0 0
    %186 = vmatprep.subr.bf16.mxu0 0
    %187 = vmatpush1.bf16.msra.mxu0 0
    %188 = vmatprep.subr.bf16.mxu0 0
    %189 = vmatpush1.bf16.msra.mxu0 0
    %190 = vmatprep.mubr.bf16.mxu0 0
    %191 = vmatmul.mubr.bf16.gmra.mrb[0].mxu0 %v153
    %v192 = vpop.f32.mrb[0].mxu0
    %v193 = vadd.f32 0.0, %v192
    %v194 = vpop.f32.mrb[0].mxu0
    %v195 = vpop.f32.mrb[0].mxu0
    %v196 = vadd.f32 0.0, %v195
    %v197 = vpop.f32.mrb[0].mxu0
    %198 = vmatprep.mubr.bf16.mxu0 0
    %199 = vmatmul.mubr.bf16.gmra.mrb[0].mxu0 %v156
    %v200 = vpop.f32.mrb[0].mxu0
    %v201 = vadd.f32 0.0, %v200
    %v202 = vpop.f32.mrb[0].mxu0
    %v203 = vpop.f32.mrb[0].mxu0
    %v204 = vpop.f32.mrb[0].mxu0
    %205 = vdwg.mxu0
    %v208 = vunpack.c.l.b16 %v135
    %v209 = vunpack.c.l.b16 %v136
    %v210 = vpack.c.b16 %v209, %v208
    %v213 = vsel %vm151, %v133, 0
    %v216 = vsel %vm151, %v134, 0
    %218 = vmatprep.subr.bf16.mxu0 0
    %219 = vmatpush1.bf16.msra.mxu0 %v210
    %220 = vmatprep.subr.bf16.mxu0 0
    %221 = vmatpush1.bf16.msra.mxu0 0
    %222 = vmatprep.subr.bf16.mxu0 0
    %223 = vmatpush1.bf16.msra.mxu0 0
    %224 = vmatprep.subr.bf16.mxu0 0
    %225 = vmatpush1.bf16.msra.mxu0 0
    %226 = vmatprep.subr.bf16.mxu0 0
    %227 = vmatpush1.bf16.msra.mxu0 0
    %228 = vmatprep.subr.bf16.mxu0 0
    %229 = vmatpush1.bf16.msra.mxu0 0
    %230 = vmatprep.subr.bf16.mxu0 0
    %231 = vmatpush1.bf16.msra.mxu0 0
    %232 = vmatprep.subr.bf16.mxu0 0
    %233 = vmatpush1.bf16.msra.mxu0 0
    %234 = vmatprep.subr.bf16.mxu0 0
    %235 = vmatpush1.bf16.msra.mxu0 0
    %236 = vmatprep.subr.bf16.mxu0 0
    %237 = vmatpush1.bf16.msra.mxu0 0
    %238 = vmatprep.subr.bf16.mxu0 0
    %239 = vmatpush1.bf16.msra.mxu0 0
    %240 = vmatprep.subr.bf16.mxu0 0
    %241 = vmatpush1.bf16.msra.mxu0 0
    %242 = vmatprep.subr.bf16.mxu0 0
    %243 = vmatpush1.bf16.msra.mxu0 0
    %244 = vmatprep.subr.bf16.mxu0 0
    %245 = vmatpush1.bf16.msra.mxu0 0
    %246 = vmatprep.subr.bf16.mxu0 0
    %247 = vmatpush1.bf16.msra.mxu0 0
    %248 = vmatprep.subr.bf16.mxu0 0
    %249 = vmatpush1.bf16.msra.mxu0 0
    %250 = vmatprep.mubr.bf16.mxu0 0
    %251 = vmatmul.mubr.bf16.gmra.mrb[0].mxu0 %v213
    %v252 = vpop.f32.mrb[0].mxu0
    %v253 = vadd.f32 %v193, %v252
    %v254 = vpop.f32.mrb[0].mxu0
    %v255 = vpop.f32.mrb[0].mxu0
    %v256 = vadd.f32 %v196, %v255
    %v257 = vpop.f32.mrb[0].mxu0
    %258 = vmatprep.mubr.bf16.mxu0 0
    %259 = vmatmul.mubr.bf16.gmra.mrb[0].mxu0 %v216
    %v260 = vpop.f32.mrb[0].mxu0
    %v261 = vadd.f32 %v201, %v260
    %v262 = vpop.f32.mrb[0].mxu0
    %v263 = vpop.f32.mrb[0].mxu0
    %v264 = vpop.f32.mrb[0].mxu0
    %265 = vdwg.mxu0
    %v266 = vld [vmem:[%s1 + $0x60] sm:$0xf]
    %v267 = vld [vmem:[%s1 + $0x68] sm:$0xf]
    %vm268 = vcmask 1045504
    %v269 = vrot.slane %v133, 2
    %v270 = vrot.slane %v134, 2
    %v271 = vsel %vm268, %v269, %v270
    %v274 = vunpack.c.l.b16 %v266
    %v275 = vunpack.c.l.b16 %v267
    %v276 = vpack.c.b16 %v275, %v274
    %v279 = vsel %vm151, %v271, 0
    %v282 = vsel %vm151, %v270, 0
    %284 = vmatprep.subr.bf16.mxu0 0
    %285 = vmatpush1.bf16.msra.mxu0 %v276
    %286 = vmatprep.subr.bf16.mxu0 0
    %287 = vmatpush1.bf16.msra.mxu0 0
    %288 = vmatprep.subr.bf16.mxu0 0
    %289 = vmatpush1.bf16.msra.mxu0 0
    %290 = vmatprep.subr.bf16.mxu0 0
    %291 = vmatpush1.bf16.msra.mxu0 0
    %292 = vmatprep.subr.bf16.mxu0 0
    %293 = vmatpush1.bf16.msra.mxu0 0
    %294 = vmatprep.subr.bf16.mxu0 0
    %295 = vmatpush1.bf16.msra.mxu0 0
    %296 = vmatprep.subr.bf16.mxu0 0
    %297 = vmatpush1.bf16.msra.mxu0 0
    %298 = vmatprep.subr.bf16.mxu0 0
    %299 = vmatpush1.bf16.msra.mxu0 0
    %300 = vmatprep.subr.bf16.mxu0 0
    %301 = vmatpush1.bf16.msra.mxu0 0
    %302 = vmatprep.subr.bf16.mxu0 0
    %303 = vmatpush1.bf16.msra.mxu0 0
    %304 = vmatprep.subr.bf16.mxu0 0
    %305 = vmatpush1.bf16.msra.mxu0 0
    %306 = vmatprep.subr.bf16.mxu0 0
    %307 = vmatpush1.bf16.msra.mxu0 0
    %308 = vmatprep.subr.bf16.mxu0 0
    %309 = vmatpush1.bf16.msra.mxu0 0
    %310 = vmatprep.subr.bf16.mxu0 0
    %311 = vmatpush1.bf16.msra.mxu0 0
    %312 = vmatprep.subr.bf16.mxu0 0
    %313 = vmatpush1.bf16.msra.mxu0 0
    %314 = vmatprep.subr.bf16.mxu0 0
    %315 = vmatpush1.bf16.msra.mxu0 0
    %316 = vmatprep.mubr.bf16.mxu0 0
    %317 = vmatmul.mubr.bf16.gmra.mrb[0].mxu0 %v279
    %v318 = vpop.f32.mrb[0].mxu0
    %v319 = vadd.f32 0.0, %v318
    %v320 = vpop.f32.mrb[0].mxu0
    %v321 = vpop.f32.mrb[0].mxu0
    %v322 = vadd.f32 0.0, %v321
    %v323 = vpop.f32.mrb[0].mxu0
    %324 = vmatprep.mubr.bf16.mxu0 0
    %325 = vmatmul.mubr.bf16.gmra.mrb[0].mxu0 %v282
    %v326 = vpop.f32.mrb[0].mxu0
    %v327 = vadd.f32 0.0, %v326
    %v328 = vpop.f32.mrb[0].mxu0
    %v329 = vpop.f32.mrb[0].mxu0
    %v330 = vpop.f32.mrb[0].mxu0
    %331 = vdwg.mxu0
    %v332 = vadd.f32 %v253, %v319
    %v333 = vadd.f32 %v256, %v322
    %v334 = vadd.f32 %v261, %v327
    %v335 = vlaneseq
    %v336 = vshrl.u32 %v335, 7
    %v337 = vsub.s32 0, %v336
    %v338 = vrot.slane %v16, %v337
    %v339 = vadd.f32 %v332, %v338
    %v340 = vadd.f32 %v333, %v338
    %v341 = vadd.f32 %v334, %v338
    %v342 = vmax.f32 %v339, 0.0
    %v343 = vmax.f32 %v340, 0.0
    %v344 = vmax.f32 %v341, 0.0
    %v345 = vpack.c.bf16 %v343, %v342
    %v346 = vpack.c.bf16 %v344, %v344
    %v347 = vld [vmem:[%s1 + $0x70] sm:$0xf]
    %v348 = vld [vmem:[%s1 + $0x80] sm:$0xf]
    %v351 = vrot.slane %v345, 1
    %v352 = vrot.slane %v346, 1
    %v353 = vsel %vm141, %v351, %v352
    %vm354 = vcmask 64512
    %v356 = vsel %vm354, %v353, 0
    %vm358 = vcmask 1043456
    %v360 = vsel %vm358, %v348, 0
    %362 = vmatprep.subr.bf16.mxu0 0
    %363 = vmatpush1.bf16.msra.mxu0 %v360
    %364 = vmatprep.subr.bf16.mxu0 0
    %365 = vmatpush1.bf16.msra.mxu0 0
    %366 = vmatprep.subr.bf16.mxu0 0
    %367 = vmatpush1.bf16.msra.mxu0 0
    %368 = vmatprep.subr.bf16.mxu0 0
    %369 = vmatpush1.bf16.msra.mxu0 0
    %370 = vmatprep.subr.bf16.mxu0 0
    %371 = vmatpush1.bf16.msra.mxu0 0
    %372 = vmatprep.subr.bf16.mxu0 0
    %373 = vmatpush1.bf16.msra.mxu0 0
    %374 = vmatprep.subr.bf16.mxu0 0
    %375 = vmatpush1.bf16.msra.mxu0 0
    %376 = vmatprep.subr.bf16.mxu0 0
    %377 = vmatpush1.bf16.msra.mxu0 0
    %378 = vmatprep.subr.bf16.mxu0 0
    %379 = vmatpush1.bf16.msra.mxu0 0
    %380 = vmatprep.subr.bf16.mxu0 0
    %381 = vmatpush1.bf16.msra.mxu0 0
    %382 = vmatprep.subr.bf16.mxu0 0
    %383 = vmatpush1.bf16.msra.mxu0 0
    %384 = vmatprep.subr.bf16.mxu0 0
    %385 = vmatpush1.bf16.msra.mxu0 0
    %386 = vmatprep.subr.bf16.mxu0 0
    %387 = vmatpush1.bf16.msra.mxu0 0
    %388 = vmatprep.subr.bf16.mxu0 0
    %389 = vmatpush1.bf16.msra.mxu0 0
    %390 = vmatprep.subr.bf16.mxu0 0
    %391 = vmatpush1.bf16.msra.mxu0 0
    %392 = vmatprep.subr.bf16.mxu0 0
    %393 = vmatpush1.bf16.msra.mxu0 0
    %394 = vmatprep.mubr.bf16.mxu0 0
    %395 = vmatmul.mubr.bf16.gmra.mrb[0].mxu0 %v356
    %v396 = vpop.f32.mrb[0].mxu0
    %v397 = vadd.f32 0.0, %v396
    %v398 = vpop.f32.mrb[0].mxu0
    %v399 = vpop.f32.mrb[0].mxu0
    %v400 = vadd.f32 0.0, %v399
    %v401 = vpop.f32.mrb[0].mxu0
    %402 = vdwg.mxu0
    %v404 = vsel %vm354, %v345, 0
    %v407 = vsel %vm358, %v347, 0
    %409 = vmatprep.subr.bf16.mxu0 0
    %410 = vmatpush1.bf16.msra.mxu0 %v407
    %411 = vmatprep.subr.bf16.mxu0 0
    %412 = vmatpush1.bf16.msra.mxu0 0
    %413 = vmatprep.subr.bf16.mxu0 0
    %414 = vmatpush1.bf16.msra.mxu0 0
    %415 = vmatprep.subr.bf16.mxu0 0
    %416 = vmatpush1.bf16.msra.mxu0 0
    %417 = vmatprep.subr.bf16.mxu0 0
    %418 = vmatpush1.bf16.msra.mxu0 0
    %419 = vmatprep.subr.bf16.mxu0 0
    %420 = vmatpush1.bf16.msra.mxu0 0
    %421 = vmatprep.subr.bf16.mxu0 0
    %422 = vmatpush1.bf16.msra.mxu0 0
    %423 = vmatprep.subr.bf16.mxu0 0
    %424 = vmatpush1.bf16.msra.mxu0 0
    %425 = vmatprep.subr.bf16.mxu0 0
    %426 = vmatpush1.bf16.msra.mxu0 0
    %427 = vmatprep.subr.bf16.mxu0 0
    %428 = vmatpush1.bf16.msra.mxu0 0
    %429 = vmatprep.subr.bf16.mxu0 0
    %430 = vmatpush1.bf16.msra.mxu0 0
    %431 = vmatprep.subr.bf16.mxu0 0
    %432 = vmatpush1.bf16.msra.mxu0 0
    %433 = vmatprep.subr.bf16.mxu0 0
    %434 = vmatpush1.bf16.msra.mxu0 0
    %435 = vmatprep.subr.bf16.mxu0 0
    %436 = vmatpush1.bf16.msra.mxu0 0
    %437 = vmatprep.subr.bf16.mxu0 0
    %438 = vmatpush1.bf16.msra.mxu0 0
    %439 = vmatprep.subr.bf16.mxu0 0
    %440 = vmatpush1.bf16.msra.mxu0 0
    %441 = vmatprep.mubr.bf16.mxu0 0
    %442 = vmatmul.mubr.bf16.gmra.mrb[0].mxu0 %v404
    %v443 = vpop.f32.mrb[0].mxu0
    %v444 = vadd.f32 %v397, %v443
    %v445 = vpop.f32.mrb[0].mxu0
    %v446 = vpop.f32.mrb[0].mxu0
    %v447 = vadd.f32 %v400, %v446
    %v448 = vpop.f32.mrb[0].mxu0
    %449 = vdwg.mxu0
    %v450 = vld [vmem:[%s1 + $0x90] sm:$0xf]
    %v451 = vrot.slane %v345, 2
    %v452 = vrot.slane %v346, 2
    %v453 = vsel %vm268, %v451, %v452
    %v455 = vsel %vm354, %v453, 0
    %v458 = vsel %vm358, %v450, 0
    %460 = vmatprep.subr.bf16.mxu0 0
    %461 = vmatpush1.bf16.msra.mxu0 %v458
    %462 = vmatprep.subr.bf16.mxu0 0
    %463 = vmatpush1.bf16.msra.mxu0 0
    %464 = vmatprep.subr.bf16.mxu0 0
    %465 = vmatpush1.bf16.msra.mxu0 0
    %466 = vmatprep.subr.bf16.mxu0 0
    %467 = vmatpush1.bf16.msra.mxu0 0
    %468 = vmatprep.subr.bf16.mxu0 0
    %469 = vmatpush1.bf16.msra.mxu0 0
    %470 = vmatprep.subr.bf16.mxu0 0
    %471 = vmatpush1.bf16.msra.mxu0 0
    %472 = vmatprep.subr.bf16.mxu0 0
    %473 = vmatpush1.bf16.msra.mxu0 0
    %474 = vmatprep.subr.bf16.mxu0 0
    %475 = vmatpush1.bf16.msra.mxu0 0
    %476 = vmatprep.subr.bf16.mxu0 0
    %477 = vmatpush1.bf16.msra.mxu0 0
    %478 = vmatprep.subr.bf16.mxu0 0
    %479 = vmatpush1.bf16.msra.mxu0 0
    %480 = vmatprep.subr.bf16.mxu0 0
    %481 = vmatpush1.bf16.msra.mxu0 0
    %482 = vmatprep.subr.bf16.mxu0 0
    %483 = vmatpush1.bf16.msra.mxu0 0
    %484 = vmatprep.subr.bf16.mxu0 0
    %485 = vmatpush1.bf16.msra.mxu0 0
    %486 = vmatprep.subr.bf16.mxu0 0
    %487 = vmatpush1.bf16.msra.mxu0 0
    %488 = vmatprep.subr.bf16.mxu0 0
    %489 = vmatpush1.bf16.msra.mxu0 0
    %490 = vmatprep.subr.bf16.mxu0 0
    %491 = vmatpush1.bf16.msra.mxu0 0
    %492 = vmatprep.mubr.bf16.mxu0 0
    %493 = vmatmul.mubr.bf16.gmra.mrb[0].mxu0 %v455
    %v494 = vpop.f32.mrb[0].mxu0
    %v495 = vadd.f32 0.0, %v494
    %v496 = vpop.f32.mrb[0].mxu0
    %v497 = vpop.f32.mrb[0].mxu0
    %v498 = vadd.f32 0.0, %v497
    %v499 = vpop.f32.mrb[0].mxu0
    %500 = vdwg.mxu0
    %v501 = vadd.f32 %v444, %v495
    %v502 = vadd.f32 %v447, %v498
    %v503 = vlaneseq
    %v504 = vshrl.u32 %v503, 7
    %v505 = vsub.s32 0, %v504
    %v506 = vrot.slane %v17, %v505
    %v507 = vadd.f32 %v501, %v506
    %v508 = vadd.f32 %v502, %v506
    %v509 = vmax.f32 %v507, 0.0
    %v510 = vmax.f32 %v508, 0.0
    %v511 = vpack.c.bf16 %v510, %v509
    %v512 = vld [vmem:[%s1 + $0xa0] sm:$0xf]
    %v513 = vlaneseq
    %v514 = vshrl.u32 %v513, 7
    %v515 = vsub.s32 0, %v514
    %v516 = vrot.slane %v18, %v515
    %v518 = vsel %vm354, %v511, 0
    %v521 = vsel %vm358, %v512, 0
    %523 = vmatprep.subr.bf16.mxu0 0
    %524 = vmatpush1.bf16.msra.mxu0 %v521
    %525 = vmatprep.subr.bf16.mxu0 0
    %526 = vmatpush1.bf16.msra.mxu0 0
    %527 = vmatprep.subr.bf16.mxu0 0
    %528 = vmatpush1.bf16.msra.mxu0 0
    %529 = vmatprep.subr.bf16.mxu0 0
    %530 = vmatpush1.bf16.msra.mxu0 0
    %531 = vmatprep.subr.bf16.mxu0 0
    %532 = vmatpush1.bf16.msra.mxu0 0
    %533 = vmatprep.subr.bf16.mxu0 0
    %534 = vmatpush1.bf16.msra.mxu0 0
    %535 = vmatprep.subr.bf16.mxu0 0
    %536 = vmatpush1.bf16.msra.mxu0 0
    %537 = vmatprep.subr.bf16.mxu0 0
    %538 = vmatpush1.bf16.msra.mxu0 0
    %539 = vmatprep.subr.bf16.mxu0 0
    %540 = vmatpush1.bf16.msra.mxu0 0
    %541 = vmatprep.subr.bf16.mxu0 0
    %542 = vmatpush1.bf16.msra.mxu0 0
    %543 = vmatprep.subr.bf16.mxu0 0
    %544 = vmatpush1.bf16.msra.mxu0 0
    %545 = vmatprep.subr.bf16.mxu0 0
    %546 = vmatpush1.bf16.msra.mxu0 0
    %547 = vmatprep.subr.bf16.mxu0 0
    %548 = vmatpush1.bf16.msra.mxu0 0
    %549 = vmatprep.subr.bf16.mxu0 0
    %550 = vmatpush1.bf16.msra.mxu0 0
    %551 = vmatprep.subr.bf16.mxu0 0
    %552 = vmatpush1.bf16.msra.mxu0 0
    %553 = vmatprep.subr.bf16.mxu0 0
    %554 = vmatpush1.bf16.msra.mxu0 0
    %555 = vmatprep.mubr.bf16.mxu0 0
    %556 = vmatmul.mubr.bf16.gmra.mrb[0].mxu0 %v518
    %v557 = vpop.f32.mrb[0].mxu0
    %v558 = vadd.f32 %v516, %v557
    %v559 = vpop.f32.mrb[0].mxu0
    %v560 = vpop.f32.mrb[0].mxu0
    %v561 = vadd.f32 %v516, %v560
    %v562 = vpop.f32.mrb[0].mxu0
    %563 = vdwg.mxu0
    %564 = vst [vmem:[#allocation2] sm:$0x3] %v558
    %s565 = scalar_lea.vmem [#allocation2], 2
    %566 = vst [vmem:[%s565 - $0x2] sm:$0xc] %v558
    %s567 = scalar_lea.vmem [#allocation2], 4
    %568 = vst [vmem:[%s567 - $0x4] sm:$0x30] %v558
    %s569 = scalar_lea.vmem [#allocation2], 6
    %570 = vst [vmem:[%s569 - $0x6] sm:$0xc0] %v558
    %s571 = scalar_lea.vmem [#allocation2], 8
    %572 = vst [vmem:[%s571] sm:$0x3] %v561
    %s573 = scalar_lea.vmem [#allocation2], 10
    %574 = vst [vmem:[%s573 - $0x2] sm:$0xc] %v561
    %s575 = scalar_lea.vmem [#allocation2], 12
    %576 = vst [vmem:[%s575 - $0x4] sm:$0x30] %v561
    %s577 = scalar_lea.vmem [#allocation2], 14
    %578 = vst [vmem:[%s577 - $0x6] sm:$0xc0] %v561
    %v579 = vld [vmem:[%s1 + $0xb0] sm:$0xff]
    %v580 = vld [vmem:[%s1 + $0xb8] sm:$0xff]
    %v581 = vld [vmem:[%s1 + $0xc0] sm:$0xff]
    %v582 = vld [vmem:[%s1 + $0xc8] sm:$0xff]
    %v583 = vld [vmem:[%s1 + $0xd0] sm:$0xff]
    %v584 = vld [vmem:[%s1 + $0xd8] sm:$0xff]
    %v585 = vld [vmem:[%s1 + $0xe0] sm:$0xff]
    %v586 = vld [vmem:[%s1 + $0xe8] sm:$0xff]
    %v587 = vld [vmem:[%s1 + $0xf0] sm:$0xf]
    %v588 = vld [vmem:[%s1 + $0xf8] sm:$0xf]
    %v589 = vld [vmem:[%s1 + $0x100] sm:$0xf]
    %v590 = vld [vmem:[%s1 + $0x108] sm:$0xf]
    %v591 = vld [vmem:[%s1 + $0x110] sm:$0xf]
    %v592 = vld [vmem:[%s1 + $0x118] sm:$0xf]
    %v593 = vld [vmem:[%s1 + $0x120] sm:$0xf]
    %v594 = vld [vmem:[%s1 + $0x128] sm:$0xf]
    %v595 = vpack.c.bf16 0.0, 0.0
    %v604 = vunpack.c.l.b16 %v579
    %v605 = vunpack.c.h.b16 %v579
    %v606 = vunpack.c.l.b16 %v580
    %v607 = vunpack.c.h.b16 %v580
    %v608 = vunpack.c.l.b16 %v581
    %v609 = vunpack.c.h.b16 %v581
    %v610 = vunpack.c.l.b16 %v582
    %v611 = vunpack.c.h.b16 %v582
    %v612 = vunpack.c.l.b16 %v583
    %v613 = vunpack.c.h.b16 %v583
    %v614 = vunpack.c.l.b16 %v584
    %v615 = vunpack.c.h.b16 %v584
    %v616 = vunpack.c.l.b16 %v585
    %v617 = vunpack.c.h.b16 %v585
    %v618 = vunpack.c.l.b16 %v586
    %v619 = vunpack.c.h.b16 %v586
    %v620 = vpack.c.b16 %v606, %v604
    %v621 = vpack.c.b16 %v607, %v605
    %v622 = vpack.c.b16 %v610, %v608
    %v623 = vpack.c.b16 %v611, %v609
    %v624 = vpack.c.b16 %v614, %v612
    %v625 = vpack.c.b16 %v615, %v613
    %v626 = vpack.c.b16 %v618, %v616
    %v627 = vpack.c.b16 %v619, %v617
    %vm636 = vcmask 523264
    %v638 = vsel %vm636, %v595, 0
    %640 = vmatprep.subr.bf16.mxu0 %v621
    %641 = vmatpush1.bf16.msra.mxu0 %v620
    %642 = vmatprep.subr.bf16.mxu0 %v623
    %643 = vmatpush1.bf16.msra.mxu0 %v622
    %644 = vmatprep.subr.bf16.mxu0 %v625
    %645 = vmatpush1.bf16.msra.mxu0 %v624
    %646 = vmatprep.subr.bf16.mxu0 %v627
    %647 = vmatpush1.bf16.msra.mxu0 %v626
    %648 = vmatprep.subr.bf16.mxu0 0
    %649 = vmatpush1.bf16.msra.mxu0 0
    %650 = vmatprep.subr.bf16.mxu0 0
    %651 = vmatpush1.bf16.msra.mxu0 0
    %652 = vmatprep.subr.bf16.mxu0 0
    %653 = vmatpush1.bf16.msra.mxu0 0
    %654 = vmatprep.subr.bf16.mxu0 0
    %655 = vmatpush1.bf16.msra.mxu0 0
    %656 = vmatprep.subr.bf16.mxu0 0
    %657 = vmatpush1.bf16.msra.mxu0 0
    %658 = vmatprep.subr.bf16.mxu0 0
    %659 = vmatpush1.bf16.msra.mxu0 0
    %660 = vmatprep.subr.bf16.mxu0 0
    %661 = vmatpush1.bf16.msra.mxu0 0
    %662 = vmatprep.subr.bf16.mxu0 0
    %663 = vmatpush1.bf16.msra.mxu0 0
    %664 = vmatprep.subr.bf16.mxu0 0
    %665 = vmatpush1.bf16.msra.mxu0 0
    %666 = vmatprep.subr.bf16.mxu0 0
    %667 = vmatpush1.bf16.msra.mxu0 0
    %668 = vmatprep.subr.bf16.mxu0 0
    %669 = vmatpush1.bf16.msra.mxu0 0
    %670 = vmatprep.subr.bf16.mxu0 0
    %671 = vmatpush1.bf16.msra.mxu0 0
    %672 = vmatprep.mubr.bf16.mxu0 0
    %673 = vmatmul.mubr.bf16.gmra.mrb[0].mxu0 %v638
    %v674 = vpop.f32.mrb[0].mxu0
    %v675 = vadd.f32 0.0, %v674
    %v676 = vpop.f32.mrb[0].mxu0
    %v677 = vadd.f32 0.0, %v676
    %v678 = vpop.f32.mrb[0].mxu0
    %v679 = vpop.f32.mrb[0].mxu0
    %680 = vdwg.mxu0
    %v681 = vld [vmem:[#allocation2] sm:$0x3]
    %v682 = vadd.f32 %v681, %v675
    %v683 = vxor.u32 %v682, 2147483648
    %v684 = vmul.f32 %v683, 1.442695
    %v685 = vpow.pop %v684
    %v686 = vadd.f32 %v685, 1.0
    %v687 = vrcp.pop %v686
    %v688 = vmul.f32 1.0, %v687
    %v689 = vtanh.pop %v682
    %v690 = vmul.f32 %v688, 0.0
    %692 = vrot.lane.b32.xlu0 %v689, 32
    %v693 = vpop.permute.xlu0 %692
    %v695 = vmul.f32 %v688, %v693
    %697 = vrot.lane.b32.xlu0 %v695, 32
    %v698 = vpop.permute.xlu0 %697
    %v700 = vadd.f32 %v690, %v698
    %v701 = vtanh.pop %v700
    %703 = vrot.lane.b32.xlu0 %v701, 32
    %v704 = vpop.permute.xlu0 %703
    %v706 = vmul.f32 %v688, %v704
    %v707 = vpack.c.bf16 %v706, %v706
    %709 = vrot.lane.b32.xlu0 %v707, 64
    %v710 = vpop.permute.xlu0 %709
    %v715 = vunpack.c.l.b16 %v587
    %v716 = vunpack.c.l.b16 %v588
    %v717 = vunpack.c.l.b16 %v589
    %v718 = vunpack.c.l.b16 %v590
    %v719 = vpack.c.b16 %v716, %v715
    %v720 = vpack.c.b16 %v718, %v717
    %vm723 = vcmask 261120
    %v725 = vsel %vm723, %v710, 0
    %727 = vmatprep.subr.bf16.mxu0 0
    %728 = vmatpush1.bf16.msra.mxu0 %v719
    %729 = vmatprep.subr.bf16.mxu0 0
    %730 = vmatpush1.bf16.msra.mxu0 %v720
    %731 = vmatprep.subr.bf16.mxu0 0
    %732 = vmatpush1.bf16.msra.mxu0 0
    %733 = vmatprep.subr.bf16.mxu0 0
    %734 = vmatpush1.bf16.msra.mxu0 0
    %735 = vmatprep.subr.bf16.mxu0 0
    %736 = vmatpush1.bf16.msra.mxu0 0
    %737 = vmatprep.subr.bf16.mxu0 0
    %738 = vmatpush1.bf16.msra.mxu0 0
    %739 = vmatprep.subr.bf16.mxu0 0
    %740 = vmatpush1.bf16.msra.mxu0 0
    %741 = vmatprep.subr.bf16.mxu0 0
    %742 = vmatpush1.bf16.msra.mxu0 0
    %743 = vmatprep.subr.bf16.mxu0 0
    %744 = vmatpush1.bf16.msra.mxu0 0
    %745 = vmatprep.subr.bf16.mxu0 0
    %746 = vmatpush1.bf16.msra.mxu0 0
    %747 = vmatprep.subr.bf16.mxu0 0
    %748 = vmatpush1.bf16.msra.mxu0 0
    %749 = vmatprep.subr.bf16.mxu0 0
    %750 = vmatpush1.bf16.msra.mxu0 0
    %751 = vmatprep.subr.bf16.mxu0 0
    %752 = vmatpush1.bf16.msra.mxu0 0
    %753 = vmatprep.subr.bf16.mxu0 0
    %754 = vmatpush1.bf16.msra.mxu0 0
    %755 = vmatprep.subr.bf16.mxu0 0
    %756 = vmatpush1.bf16.msra.mxu0 0
    %757 = vmatprep.subr.bf16.mxu0 0
    %758 = vmatpush1.bf16.msra.mxu0 0
    %759 = vmatprep.mubr.bf16.mxu0 0
    %760 = vmatmul.mubr.bf16.gmra.mrb[0].mxu0 %v725
    %v761 = vpop.f32.mrb[0].mxu0
    %v762 = vadd.f32 %v677, %v761
    %v763 = vpop.f32.mrb[0].mxu0
    %v764 = vpop.f32.mrb[0].mxu0
    %v765 = vpop.f32.mrb[0].mxu0
    %766 = vdwg.mxu0
    %v767 = vlaneseq
    %v768 = vshrl.u32 %v767, 7
    %v769 = vsub.s32 0, %v768
    %v770 = vrot.slane %v19, %v769
    %v771 = vadd.f32 %v762, %v770
    %v772 = vxor.u32 %v771, 2147483648
    %v773 = vmul.f32 %v772, 1.442695
    %v774 = vpow.pop %v773
    %v775 = vadd.f32 %v774, 1.0
    %v776 = vrcp.pop %v775
    %v777 = vmul.f32 1.0, %v776
    %v778 = vtanh.pop %v771
    %v779 = vmul.f32 %v777, 0.0
    %781 = vrot.lane.b32.xlu0 %v778, 32
    %v782 = vpop.permute.xlu0 %781
    %v784 = vmul.f32 %v777, %v782
    %786 = vrot.lane.b32.xlu0 %v784, 32
    %v787 = vpop.permute.xlu0 %786
    %v789 = vadd.f32 %v779, %v787
    %v790 = vtanh.pop %v789
    %792 = vrot.lane.b32.xlu0 %v790, 32
    %v793 = vpop.permute.xlu0 %792
    %v795 = vmul.f32 %v777, %v793
    %797 = vrot.lane.b32.xlu0 %v706, 64
    %v798 = vpop.permute.xlu0 %797
    %801 = vrot.lane.b32.xlu0 %v795, 96
    %v802 = vpop.permute.xlu0 %801
    %v804 = vsel %vm723, %v798, %v802
    %v805 = vpack.c.bf16 %v804, %v804
    %v807 = vsel %vm636, %v805, 0
    %809 = vmatprep.subr.bf16.mxu0 %v621
    %810 = vmatpush1.bf16.msra.mxu0 %v620
    %811 = vmatprep.subr.bf16.mxu0 %v623
    %812 = vmatpush1.bf16.msra.mxu0 %v622
    %813 = vmatprep.subr.bf16.mxu0 %v625
    %814 = vmatpush1.bf16.msra.mxu0 %v624
    %815 = vmatprep.subr.bf16.mxu0 %v627
    %816 = vmatpush1.bf16.msra.mxu0 %v626
    %817 = vmatprep.subr.bf16.mxu0 0
    %818 = vmatpush1.bf16.msra.mxu0 0
    %819 = vmatprep.subr.bf16.mxu0 0
    %820 = vmatpush1.bf16.msra.mxu0 0
    %821 = vmatprep.subr.bf16.mxu0 0
    %822 = vmatpush1.bf16.msra.mxu0 0
    %823 = vmatprep.subr.bf16.mxu0 0
    %824 = vmatpush1.bf16.msra.mxu0 0
    %825 = vmatprep.subr.bf16.mxu0 0
    %826 = vmatpush1.bf16.msra.mxu0 0
    %827 = vmatprep.subr.bf16.mxu0 0
    %828 = vmatpush1.bf16.msra.mxu0 0
    %829 = vmatprep.subr.bf16.mxu0 0
    %830 = vmatpush1.bf16.msra.mxu0 0
    %831 = vmatprep.subr.bf16.mxu0 0
    %832 = vmatpush1.bf16.msra.mxu0 0
    %833 = vmatprep.subr.bf16.mxu0 0
    %834 = vmatpush1.bf16.msra.mxu0 0
    %835 = vmatprep.subr.bf16.mxu0 0
    %836 = vmatpush1.bf16.msra.mxu0 0
    %837 = vmatprep.subr.bf16.mxu0 0
    %838 = vmatpush1.bf16.msra.mxu0 0
    %839 = vmatprep.subr.bf16.mxu0 0
    %840 = vmatpush1.bf16.msra.mxu0 0
    %841 = vmatprep.mubr.bf16.mxu0 0
    %842 = vmatmul.mubr.bf16.gmra.mrb[0].mxu0 %v807
    %v843 = vpop.f32.mrb[0].mxu0
    %v844 = vadd.f32 0.0, %v843
    %v845 = vpop.f32.mrb[0].mxu0
    %v846 = vadd.f32 0.0, %v845
    %v847 = vpop.f32.mrb[0].mxu0
    %v848 = vpop.f32.mrb[0].mxu0
    %849 = vdwg.mxu0
    %v850 = vld [vmem:[%s565] sm:$0x3]
    %v851 = vadd.f32 %v850, %v844
    %v852 = vxor.u32 %v851, 2147483648
    %v853 = vmul.f32 %v852, 1.442695
    %v854 = vpow.pop %v853
    %v855 = vadd.f32 %v854, 1.0
    %v856 = vrcp.pop %v855
    %v857 = vmul.f32 1.0, %v856
    %v858 = vtanh.pop %v851
    %v859 = vmul.f32 %v857, %v700
    %861 = vrot.lane.b32.xlu0 %v858, 32
    %v862 = vpop.permute.xlu0 %861
    %v864 = vmul.f32 %v857, %v862
    %866 = vrot.lane.b32.xlu0 %v864, 32
    %v867 = vpop.permute.xlu0 %866
    %v869 = vadd.f32 %v859, %v867
    %v870 = vtanh.pop %v869
    %872 = vrot.lane.b32.xlu0 %v870, 32
    %v873 = vpop.permute.xlu0 %872
    %v875 = vmul.f32 %v857, %v873
    %v876 = vpack.c.bf16 %v875, %v875
    %878 = vrot.lane.b32.xlu0 %v876, 64
    %v879 = vpop.permute.xlu0 %878
    %v881 = vsel %vm723, %v879, 0
    %883 = vmatprep.subr.bf16.mxu0 0
    %884 = vmatpush1.bf16.msra.mxu0 %v719
    %885 = vmatprep.subr.bf16.mxu0 0
    %886 = vmatpush1.bf16.msra.mxu0 %v720
    %887 = vmatprep.subr.bf16.mxu0 0
    %888 = vmatpush1.bf16.msra.mxu0 0
    %889 = vmatprep.subr.bf16.mxu0 0
    %890 = vmatpush1.bf16.msra.mxu0 0
    %891 = vmatprep.subr.bf16.mxu0 0
    %892 = vmatpush1.bf16.msra.mxu0 0
    %893 = vmatprep.subr.bf16.mxu0 0
    %894 = vmatpush1.bf16.msra.mxu0 0
    %895 = vmatprep.subr.bf16.mxu0 0
    %896 = vmatpush1.bf16.msra.mxu0 0
    %897 = vmatprep.subr.bf16.mxu0 0
    %898 = vmatpush1.bf16.msra.mxu0 0
    %899 = vmatprep.subr.bf16.mxu0 0
    %900 = vmatpush1.bf16.msra.mxu0 0
    %901 = vmatprep.subr.bf16.mxu0 0
    %902 = vmatpush1.bf16.msra.mxu0 0
    %903 = vmatprep.subr.bf16.mxu0 0
    %904 = vmatpush1.bf16.msra.mxu0 0
    %905 = vmatprep.subr.bf16.mxu0 0
    %906 = vmatpush1.bf16.msra.mxu0 0
    %907 = vmatprep.subr.bf16.mxu0 0
    %908 = vmatpush1.bf16.msra.mxu0 0
    %909 = vmatprep.subr.bf16.mxu0 0
    %910 = vmatpush1.bf16.msra.mxu0 0
    %911 = vmatprep.subr.bf16.mxu0 0
    %912 = vmatpush1.bf16.msra.mxu0 0
    %913 = vmatprep.subr.bf16.mxu0 0
    %914 = vmatpush1.bf16.msra.mxu0 0
    %915 = vmatprep.mubr.bf16.mxu0 0
    %916 = vmatmul.mubr.bf16.gmra.mrb[0].mxu0 %v881
    %v917 = vpop.f32.mrb[0].mxu0
    %v918 = vadd.f32 %v846, %v917
    %v919 = vpop.f32.mrb[0].mxu0
    %v920 = vpop.f32.mrb[0].mxu0
    %v921 = vpop.f32.mrb[0].mxu0
    %922 = vdwg.mxu0
    %v923 = vadd.f32 %v918, %v770
    %v924 = vxor.u32 %v923, 2147483648
    %v925 = vmul.f32 %v924, 1.442695
    %v926 = vpow.pop %v925
    %v927 = vadd.f32 %v926, 1.0
    %v928 = vrcp.pop %v927
    %v929 = vmul.f32 1.0, %v928
    %v930 = vtanh.pop %v923
    %v931 = vmul.f32 %v929, %v789
    %933 = vrot.lane.b32.xlu0 %v930, 32
    %v934 = vpop.permute.xlu0 %933
    %v936 = vmul.f32 %v929, %v934
    %938 = vrot.lane.b32.xlu0 %v936, 32
    %v939 = vpop.permute.xlu0 %938
    %v941 = vadd.f32 %v931, %v939
    %v942 = vtanh.pop %v941
    %944 = vrot.lane.b32.xlu0 %v942, 32
    %v945 = vpop.permute.xlu0 %944
    %v947 = vmul.f32 %v929, %v945
    %949 = vrot.lane.b32.xlu0 %v875, 64
    %v950 = vpop.permute.xlu0 %949
    %953 = vrot.lane.b32.xlu0 %v947, 96
    %v954 = vpop.permute.xlu0 %953
    %v956 = vsel %vm723, %v950, %v954
    %v957 = vpack.c.bf16 %v956, %v956
    %v959 = vsel %vm636, %v957, 0
    %961 = vmatprep.subr.bf16.mxu0 %v621
    %962 = vmatpush1.bf16.msra.mxu0 %v620
    %963 = vmatprep.subr.bf16.mxu0 %v623
    %964 = vmatpush1.bf16.msra.mxu0 %v622
    %965 = vmatprep.subr.bf16.mxu0 %v625
    %966 = vmatpush1.bf16.msra.mxu0 %v624
    %967 = vmatprep.subr.bf16.mxu0 %v627
    %968 = vmatpush1.bf16.msra.mxu0 %v626
    %969 = vmatprep.subr.bf16.mxu0 0
    %970 = vmatpush1.bf16.msra.mxu0 0
    %971 = vmatprep.subr.bf16.mxu0 0
    %972 = vmatpush1.bf16.msra.mxu0 0
    %973 = vmatprep.subr.bf16.mxu0 0
    %974 = vmatpush1.bf16.msra.mxu0 0
    %975 = vmatprep.subr.bf16.mxu0 0
    %976 = vmatpush1.bf16.msra.mxu0 0
    %977 = vmatprep.subr.bf16.mxu0 0
    %978 = vmatpush1.bf16.msra.mxu0 0
    %979 = vmatprep.subr.bf16.mxu0 0
    %980 = vmatpush1.bf16.msra.mxu0 0
    %981 = vmatprep.subr.bf16.mxu0 0
    %982 = vmatpush1.bf16.msra.mxu0 0
    %983 = vmatprep.subr.bf16.mxu0 0
    %984 = vmatpush1.bf16.msra.mxu0 0
    %985 = vmatprep.subr.bf16.mxu0 0
    %986 = vmatpush1.bf16.msra.mxu0 0
    %987 = vmatprep.subr.bf16.mxu0 0
    %988 = vmatpush1.bf16.msra.mxu0 0
    %989 = vmatprep.subr.bf16.mxu0 0
    %990 = vmatpush1.bf16.msra.mxu0 0
    %991 = vmatprep.subr.bf16.mxu0 0
    %992 = vmatpush1.bf16.msra.mxu0 0
    %993 = vmatprep.mubr.bf16.mxu0 0
    %994 = vmatmul.mubr.bf16.gmra.mrb[0].mxu0 %v959
    %v995 = vpop.f32.mrb[0].mxu0
    %v996 = vadd.f32 0.0, %v995
    %v997 = vpop.f32.mrb[0].mxu0
    %v998 = vadd.f32 0.0, %v997
    %v999 = vpop.f32.mrb[0].mxu0
    %v1000 = vpop.f32.mrb[0].mxu0
    %1001 = vdwg.mxu0
    %v1002 = vld [vmem:[%s567] sm:$0x3]
    %v1003 = vadd.f32 %v1002, %v996
    %v1004 = vxor.u32 %v1003, 2147483648
    %v1005 = vmul.f32 %v1004, 1.442695
    %v1006 = vpow.pop %v1005
    %v1007 = vadd.f32 %v1006, 1.0
    %v1008 = vrcp.pop %v1007
    %v1009 = vmul.f32 1.0, %v1008
    %v1010 = vtanh.pop %v1003
    %v1011 = vmul.f32 %v1009, %v869
    %1013 = vrot.lane.b32.xlu0 %v1010, 32
    %v1014 = vpop.permute.xlu0 %1013
    %v1016 = vmul.f32 %v1009, %v1014
    %1018 = vrot.lane.b32.xlu0 %v1016, 32
    %v1019 = vpop.permute.xlu0 %1018
    %v1021 = vadd.f32 %v1011, %v1019
    %v1022 = vtanh.pop %v1021
    %1024 = vrot.lane.b32.xlu0 %v1022, 32
    %v1025 = vpop.permute.xlu0 %1024
    %v1027 = vmul.f32 %v1009, %v1025
    %v1028 = vpack.c.bf16 %v1027, %v1027
    %1030 = vrot.lane.b32.xlu0 %v1028, 64
    %v1031 = vpop.permute.xlu0 %1030
    %v1033 = vsel %vm723, %v1031, 0
    %1035 = vmatprep.subr.bf16.mxu0 0
    %1036 = vmatpush1.bf16.msra.mxu0 %v719
    %1037 = vmatprep.subr.bf16.mxu0 0
    %1038 = vmatpush1.bf16.msra.mxu0 %v720
    %1039 = vmatprep.subr.bf16.mxu0 0
    %1040 = vmatpush1.bf16.msra.mxu0 0
    %1041 = vmatprep.subr.bf16.mxu0 0
    %1042 = vmatpush1.bf16.msra.mxu0 0
    %1043 = vmatprep.subr.bf16.mxu0 0
    %1044 = vmatpush1.bf16.msra.mxu0 0
    %1045 = vmatprep.subr.bf16.mxu0 0
    %1046 = vmatpush1.bf16.msra.mxu0 0
    %1047 = vmatprep.subr.bf16.mxu0 0
    %1048 = vmatpush1.bf16.msra.mxu0 0
    %1049 = vmatprep.subr.bf16.mxu0 0
    %1050 = vmatpush1.bf16.msra.mxu0 0
    %1051 = vmatprep.subr.bf16.mxu0 0
    %1052 = vmatpush1.bf16.msra.mxu0 0
    %1053 = vmatprep.subr.bf16.mxu0 0
    %1054 = vmatpush1.bf16.msra.mxu0 0
    %1055 = vmatprep.subr.bf16.mxu0 0
    %1056 = vmatpush1.bf16.msra.mxu0 0
    %1057 = vmatprep.subr.bf16.mxu0 0
    %1058 = vmatpush1.bf16.msra.mxu0 0
    %1059 = vmatprep.subr.bf16.mxu0 0
    %1060 = vmatpush1.bf16.msra.mxu0 0
    %1061 = vmatprep.subr.bf16.mxu0 0
    %1062 = vmatpush1.bf16.msra.mxu0 0
    %1063 = vmatprep.subr.bf16.mxu0 0
    %1064 = vmatpush1.bf16.msra.mxu0 0
    %1065 = vmatprep.subr.bf16.mxu0 0
    %1066 = vmatpush1.bf16.msra.mxu0 0
    %1067 = vmatprep.mubr.bf16.mxu0 0
    %1068 = vmatmul.mubr.bf16.gmra.mrb[0].mxu0 %v1033
    %v1069 = vpop.f32.mrb[0].mxu0
    %v1070 = vadd.f32 %v998, %v1069
    %v1071 = vpop.f32.mrb[0].mxu0
    %v1072 = vpop.f32.mrb[0].mxu0
    %v1073 = vpop.f32.mrb[0].mxu0
    %1074 = vdwg.mxu0
    %v1075 = vadd.f32 %v1070, %v770
    %v1076 = vxor.u32 %v1075, 2147483648
    %v1077 = vmul.f32 %v1076, 1.442695
    %v1078 = vpow.pop %v1077
    %v1079 = vadd.f32 %v1078, 1.0
    %v1080 = vrcp.pop %v1079
    %v1081 = vmul.f32 1.0, %v1080
    %v1082 = vtanh.pop %v1075
    %v1083 = vmul.f32 %v1081, %v941
    %1085 = vrot.lane.b32.xlu0 %v1082, 32
    %v1086 = vpop.permute.xlu0 %1085
    %v1088 = vmul.f32 %v1081, %v1086
    %1090 = vrot.lane.b32.xlu0 %v1088, 32
    %v1091 = vpop.permute.xlu0 %1090
    %v1093 = vadd.f32 %v1083, %v1091
    %v1094 = vtanh.pop %v1093
    %1096 = vrot.lane.b32.xlu0 %v1094, 32
    %v1097 = vpop.permute.xlu0 %1096
    %v1099 = vmul.f32 %v1081, %v1097
    %1101 = vrot.lane.b32.xlu0 %v1027, 64
    %v1102 = vpop.permute.xlu0 %1101
    %1105 = vrot.lane.b32.xlu0 %v1099, 96
    %v1106 = vpop.permute.xlu0 %1105
    %v1108 = vsel %vm723, %v1102, %v1106
    %v1109 = vpack.c.bf16 %v1108, %v1108
    %v1111 = vsel %vm636, %v1109, 0
    %1113 = vmatprep.subr.bf16.mxu0 %v621
    %1114 = vmatpush1.bf16.msra.mxu0 %v620
    %1115 = vmatprep.subr.bf16.mxu0 %v623
    %1116 = vmatpush1.bf16.msra.mxu0 %v622
    %1117 = vmatprep.subr.bf16.mxu0 %v625
    %1118 = vmatpush1.bf16.msra.mxu0 %v624
    %1119 = vmatprep.subr.bf16.mxu0 %v627
    %1120 = vmatpush1.bf16.msra.mxu0 %v626
    %1121 = vmatprep.subr.bf16.mxu0 0
    %1122 = vmatpush1.bf16.msra.mxu0 0
    %1123 = vmatprep.subr.bf16.mxu0 0
    %1124 = vmatpush1.bf16.msra.mxu0 0
    %1125 = vmatprep.subr.bf16.mxu0 0
    %1126 = vmatpush1.bf16.msra.mxu0 0
    %1127 = vmatprep.subr.bf16.mxu0 0
    %1128 = vmatpush1.bf16.msra.mxu0 0
    %1129 = vmatprep.subr.bf16.mxu0 0
    %1130 = vmatpush1.bf16.msra.mxu0 0
    %1131 = vmatprep.subr.bf16.mxu0 0
    %1132 = vmatpush1.bf16.msra.mxu0 0
    %1133 = vmatprep.subr.bf16.mxu0 0
    %1134 = vmatpush1.bf16.msra.mxu0 0
    %1135 = vmatprep.subr.bf16.mxu0 0
    %1136 = vmatpush1.bf16.msra.mxu0 0
    %1137 = vmatprep.subr.bf16.mxu0 0
    %1138 = vmatpush1.bf16.msra.mxu0 0
    %1139 = vmatprep.subr.bf16.mxu0 0
    %1140 = vmatpush1.bf16.msra.mxu0 0
    %1141 = vmatprep.subr.bf16.mxu0 0
    %1142 = vmatpush1.bf16.msra.mxu0 0
    %1143 = vmatprep.subr.bf16.mxu0 0
    %1144 = vmatpush1.bf16.msra.mxu0 0
    %1145 = vmatprep.mubr.bf16.mxu0 0
    %1146 = vmatmul.mubr.bf16.gmra.mrb[0].mxu0 %v1111
    %v1147 = vpop.f32.mrb[0].mxu0
    %v1148 = vadd.f32 0.0, %v1147
    %v1149 = vpop.f32.mrb[0].mxu0
    %v1150 = vadd.f32 0.0, %v1149
    %v1151 = vpop.f32.mrb[0].mxu0
    %v1152 = vpop.f32.mrb[0].mxu0
    %1153 = vdwg.mxu0
    %v1154 = vld [vmem:[%s569] sm:$0x3]
    %v1155 = vadd.f32 %v1154, %v1148
    %v1156 = vxor.u32 %v1155, 2147483648
    %v1157 = vmul.f32 %v1156, 1.442695
    %v1158 = vpow.pop %v1157
    %v1159 = vadd.f32 %v1158, 1.0
    %v1160 = vrcp.pop %v1159
    %v1161 = vmul.f32 1.0, %v1160
    %v1162 = vtanh.pop %v1155
    %v1163 = vmul.f32 %v1161, %v1021
    %1165 = vrot.lane.b32.xlu0 %v1162, 32
    %v1166 = vpop.permute.xlu0 %1165
    %v1168 = vmul.f32 %v1161, %v1166
    %1170 = vrot.lane.b32.xlu0 %v1168, 32
    %v1171 = vpop.permute.xlu0 %1170
    %v1173 = vadd.f32 %v1163, %v1171
    %v1174 = vtanh.pop %v1173
    %1176 = vrot.lane.b32.xlu0 %v1174, 32
    %v1177 = vpop.permute.xlu0 %1176
    %v1179 = vmul.f32 %v1161, %v1177
    %v1180 = vpack.c.bf16 %v1179, %v1179
    %1182 = vrot.lane.b32.xlu0 %v1180, 64
    %v1183 = vpop.permute.xlu0 %1182
    %v1185 = vsel %vm723, %v1183, 0
    %1187 = vmatprep.subr.bf16.mxu0 0
    %1188 = vmatpush1.bf16.msra.mxu0 %v719
    %1189 = vmatprep.subr.bf16.mxu0 0
    %1190 = vmatpush1.bf16.msra.mxu0 %v720
    %1191 = vmatprep.subr.bf16.mxu0 0
    %1192 = vmatpush1.bf16.msra.mxu0 0
    %1193 = vmatprep.subr.bf16.mxu0 0
    %1194 = vmatpush1.bf16.msra.mxu0 0
    %1195 = vmatprep.subr.bf16.mxu0 0
    %1196 = vmatpush1.bf16.msra.mxu0 0
    %1197 = vmatprep.subr.bf16.mxu0 0
    %1198 = vmatpush1.bf16.msra.mxu0 0
    %1199 = vmatprep.subr.bf16.mxu0 0
    %1200 = vmatpush1.bf16.msra.mxu0 0
    %1201 = vmatprep.subr.bf16.mxu0 0
    %1202 = vmatpush1.bf16.msra.mxu0 0
    %1203 = vmatprep.subr.bf16.mxu0 0
    %1204 = vmatpush1.bf16.msra.mxu0 0
    %1205 = vmatprep.subr.bf16.mxu0 0
    %1206 = vmatpush1.bf16.msra.mxu0 0
    %1207 = vmatprep.subr.bf16.mxu0 0
    %1208 = vmatpush1.bf16.msra.mxu0 0
    %1209 = vmatprep.subr.bf16.mxu0 0
    %1210 = vmatpush1.bf16.msra.mxu0 0
    %1211 = vmatprep.subr.bf16.mxu0 0
    %1212 = vmatpush1.bf16.msra.mxu0 0
    %1213 = vmatprep.subr.bf16.mxu0 0
    %1214 = vmatpush1.bf16.msra.mxu0 0
    %1215 = vmatprep.subr.bf16.mxu0 0
    %1216 = vmatpush1.bf16.msra.mxu0 0
    %1217 = vmatprep.subr.bf16.mxu0 0
    %1218 = vmatpush1.bf16.msra.mxu0 0
    %1219 = vmatprep.mubr.bf16.mxu0 0
    %1220 = vmatmul.mubr.bf16.gmra.mrb[0].mxu0 %v1185
    %v1221 = vpop.f32.mrb[0].mxu0
    %v1222 = vadd.f32 %v1150, %v1221
    %v1223 = vpop.f32.mrb[0].mxu0
    %v1224 = vpop.f32.mrb[0].mxu0
    %v1225 = vpop.f32.mrb[0].mxu0
    %1226 = vdwg.mxu0
    %v1227 = vadd.f32 %v1222, %v770
    %v1228 = vxor.u32 %v1227, 2147483648
    %v1229 = vmul.f32 %v1228, 1.442695
    %v1230 = vpow.pop %v1229
    %v1231 = vadd.f32 %v1230, 1.0
    %v1232 = vrcp.pop %v1231
    %v1233 = vmul.f32 1.0, %v1232
    %v1234 = vtanh.pop %v1227
    %v1235 = vmul.f32 %v1233, %v1093
    %1237 = vrot.lane.b32.xlu0 %v1234, 32
    %v1238 = vpop.permute.xlu0 %1237
    %v1240 = vmul.f32 %v1233, %v1238
    %1242 = vrot.lane.b32.xlu0 %v1240, 32
    %v1243 = vpop.permute.xlu0 %1242
    %v1245 = vadd.f32 %v1235, %v1243
    %v1246 = vtanh.pop %v1245
    %1248 = vrot.lane.b32.xlu0 %v1246, 32
    %v1249 = vpop.permute.xlu0 %1248
    %v1251 = vmul.f32 %v1233, %v1249
    %1253 = vrot.lane.b32.xlu0 %v1179, 64
    %v1254 = vpop.permute.xlu0 %1253
    %1257 = vrot.lane.b32.xlu0 %v1251, 96
    %v1258 = vpop.permute.xlu0 %1257
    %v1260 = vsel %vm723, %v1254, %v1258
    %v1261 = vpack.c.bf16 %v1260, %v1260
    %v1263 = vsel %vm636, %v1261, 0
    %1265 = vmatprep.subr.bf16.mxu0 %v621
    %1266 = vmatpush1.bf16.msra.mxu0 %v620
    %1267 = vmatprep.subr.bf16.mxu0 %v623
    %1268 = vmatpush1.bf16.msra.mxu0 %v622
    %1269 = vmatprep.subr.bf16.mxu0 %v625
    %1270 = vmatpush1.bf16.msra.mxu0 %v624
    %1271 = vmatprep.subr.bf16.mxu0 %v627
    %1272 = vmatpush1.bf16.msra.mxu0 %v626
    %1273 = vmatprep.subr.bf16.mxu0 0
    %1274 = vmatpush1.bf16.msra.mxu0 0
    %1275 = vmatprep.subr.bf16.mxu0 0
    %1276 = vmatpush1.bf16.msra.mxu0 0
    %1277 = vmatprep.subr.bf16.mxu0 0
    %1278 = vmatpush1.bf16.msra.mxu0 0
    %1279 = vmatprep.subr.bf16.mxu0 0
    %1280 = vmatpush1.bf16.msra.mxu0 0
    %1281 = vmatprep.subr.bf16.mxu0 0
    %1282 = vmatpush1.bf16.msra.mxu0 0
    %1283 = vmatprep.subr.bf16.mxu0 0
    %1284 = vmatpush1.bf16.msra.mxu0 0
    %1285 = vmatprep.subr.bf16.mxu0 0
    %1286 = vmatpush1.bf16.msra.mxu0 0
    %1287 = vmatprep.subr.bf16.mxu0 0
    %1288 = vmatpush1.bf16.msra.mxu0 0
    %1289 = vmatprep.subr.bf16.mxu0 0
    %1290 = vmatpush1.bf16.msra.mxu0 0
    %1291 = vmatprep.subr.bf16.mxu0 0
    %1292 = vmatpush1.bf16.msra.mxu0 0
    %1293 = vmatprep.subr.bf16.mxu0 0
    %1294 = vmatpush1.bf16.msra.mxu0 0
    %1295 = vmatprep.subr.bf16.mxu0 0
    %1296 = vmatpush1.bf16.msra.mxu0 0
    %1297 = vmatprep.mubr.bf16.mxu0 0
    %1298 = vmatmul.mubr.bf16.gmra.mrb[0].mxu0 %v1263
    %v1299 = vpop.f32.mrb[0].mxu0
    %v1300 = vadd.f32 0.0, %v1299
    %v1301 = vpop.f32.mrb[0].mxu0
    %v1302 = vadd.f32 0.0, %v1301
    %v1303 = vpop.f32.mrb[0].mxu0
    %v1304 = vpop.f32.mrb[0].mxu0
    %1305 = vdwg.mxu0
    %v1306 = vld [vmem:[%s571] sm:$0x3]
    %v1307 = vadd.f32 %v1306, %v1300
    %v1308 = vxor.u32 %v1307, 2147483648
    %v1309 = vmul.f32 %v1308, 1.442695
    %v1310 = vpow.pop %v1309
    %v1311 = vadd.f32 %v1310, 1.0
    %v1312 = vrcp.pop %v1311
    %v1313 = vmul.f32 1.0, %v1312
    %v1314 = vtanh.pop %v1307
    %v1315 = vmul.f32 %v1313, %v1173
    %1317 = vrot.lane.b32.xlu0 %v1314, 32
    %v1318 = vpop.permute.xlu0 %1317
    %v1320 = vmul.f32 %v1313, %v1318
    %1322 = vrot.lane.b32.xlu0 %v1320, 32
    %v1323 = vpop.permute.xlu0 %1322
    %v1325 = vadd.f32 %v1315, %v1323
    %v1326 = vtanh.pop %v1325
    %1328 = vrot.lane.b32.xlu0 %v1326, 32
    %v1329 = vpop.permute.xlu0 %1328
    %v1331 = vmul.f32 %v1313, %v1329
    %v1332 = vpack.c.bf16 %v1331, %v1331
    %1334 = vrot.lane.b32.xlu0 %v1332, 64
    %v1335 = vpop.permute.xlu0 %1334
    %v1337 = vsel %vm723, %v1335, 0
    %1339 = vmatprep.subr.bf16.mxu0 0
    %1340 = vmatpush1.bf16.msra.mxu0 %v719
    %1341 = vmatprep.subr.bf16.mxu0 0
    %1342 = vmatpush1.bf16.msra.mxu0 %v720
    %1343 = vmatprep.subr.bf16.mxu0 0
    %1344 = vmatpush1.bf16.msra.mxu0 0
    %1345 = vmatprep.subr.bf16.mxu0 0
    %1346 = vmatpush1.bf16.msra.mxu0 0
    %1347 = vmatprep.subr.bf16.mxu0 0
    %1348 = vmatpush1.bf16.msra.mxu0 0
    %1349 = vmatprep.subr.bf16.mxu0 0
    %1350 = vmatpush1.bf16.msra.mxu0 0
    %1351 = vmatprep.subr.bf16.mxu0 0
    %1352 = vmatpush1.bf16.msra.mxu0 0
    %1353 = vmatprep.subr.bf16.mxu0 0
    %1354 = vmatpush1.bf16.msra.mxu0 0
    %1355 = vmatprep.subr.bf16.mxu0 0
    %1356 = vmatpush1.bf16.msra.mxu0 0
    %1357 = vmatprep.subr.bf16.mxu0 0
    %1358 = vmatpush1.bf16.msra.mxu0 0
    %1359 = vmatprep.subr.bf16.mxu0 0
    %1360 = vmatpush1.bf16.msra.mxu0 0
    %1361 = vmatprep.subr.bf16.mxu0 0
    %1362 = vmatpush1.bf16.msra.mxu0 0
    %1363 = vmatprep.subr.bf16.mxu0 0
    %1364 = vmatpush1.bf16.msra.mxu0 0
    %1365 = vmatprep.subr.bf16.mxu0 0
    %1366 = vmatpush1.bf16.msra.mxu0 0
    %1367 = vmatprep.subr.bf16.mxu0 0
    %1368 = vmatpush1.bf16.msra.mxu0 0
    %1369 = vmatprep.subr.bf16.mxu0 0
    %1370 = vmatpush1.bf16.msra.mxu0 0
    %1371 = vmatprep.mubr.bf16.mxu0 0
    %1372 = vmatmul.mubr.bf16.gmra.mrb[0].mxu0 %v1337
    %v1373 = vpop.f32.mrb[0].mxu0
    %v1374 = vadd.f32 %v1302, %v1373
    %v1375 = vpop.f32.mrb[0].mxu0
    %v1376 = vpop.f32.mrb[0].mxu0
    %v1377 = vpop.f32.mrb[0].mxu0
    %1378 = vdwg.mxu0
    %v1379 = vadd.f32 %v1374, %v770
    %v1380 = vxor.u32 %v1379, 2147483648
    %v1381 = vmul.f32 %v1380, 1.442695
    %v1382 = vpow.pop %v1381
    %v1383 = vadd.f32 %v1382, 1.0
    %v1384 = vrcp.pop %v1383
    %v1385 = vmul.f32 1.0, %v1384
    %v1386 = vtanh.pop %v1379
    %v1387 = vmul.f32 %v1385, %v1245
    %1389 = vrot.lane.b32.xlu0 %v1386, 32
    %v1390 = vpop.permute.xlu0 %1389
    %v1392 = vmul.f32 %v1385, %v1390
    %1394 = vrot.lane.b32.xlu0 %v1392, 32
    %v1395 = vpop.permute.xlu0 %1394
    %v1397 = vadd.f32 %v1387, %v1395
    %v1398 = vtanh.pop %v1397
    %1400 = vrot.lane.b32.xlu0 %v1398, 32
    %v1401 = vpop.permute.xlu0 %1400
    %v1403 = vmul.f32 %v1385, %v1401
    %1405 = vrot.lane.b32.xlu0 %v1331, 64
    %v1406 = vpop.permute.xlu0 %1405
    %1409 = vrot.lane.b32.xlu0 %v1403, 96
    %v1410 = vpop.permute.xlu0 %1409
    %v1412 = vsel %vm723, %v1406, %v1410
    %v1413 = vpack.c.bf16 %v1412, %v1412
    %v1415 = vsel %vm636, %v1413, 0
    %1417 = vmatprep.subr.bf16.mxu0 %v621
    %1418 = vmatpush1.bf16.msra.mxu0 %v620
    %1419 = vmatprep.subr.bf16.mxu0 %v623
    %1420 = vmatpush1.bf16.msra.mxu0 %v622
    %1421 = vmatprep.subr.bf16.mxu0 %v625
    %1422 = vmatpush1.bf16.msra.mxu0 %v624
    %1423 = vmatprep.subr.bf16.mxu0 %v627
    %1424 = vmatpush1.bf16.msra.mxu0 %v626
    %1425 = vmatprep.subr.bf16.mxu0 0
    %1426 = vmatpush1.bf16.msra.mxu0 0
    %1427 = vmatprep.subr.bf16.mxu0 0
    %1428 = vmatpush1.bf16.msra.mxu0 0
    %1429 = vmatprep.subr.bf16.mxu0 0
    %1430 = vmatpush1.bf16.msra.mxu0 0
    %1431 = vmatprep.subr.bf16.mxu0 0
    %1432 = vmatpush1.bf16.msra.mxu0 0
    %1433 = vmatprep.subr.bf16.mxu0 0
    %1434 = vmatpush1.bf16.msra.mxu0 0
    %1435 = vmatprep.subr.bf16.mxu0 0
    %1436 = vmatpush1.bf16.msra.mxu0 0
    %1437 = vmatprep.subr.bf16.mxu0 0
    %1438 = vmatpush1.bf16.msra.mxu0 0
    %1439 = vmatprep.subr.bf16.mxu0 0
    %1440 = vmatpush1.bf16.msra.mxu0 0
    %1441 = vmatprep.subr.bf16.mxu0 0
    %1442 = vmatpush1.bf16.msra.mxu0 0
    %1443 = vmatprep.subr.bf16.mxu0 0
    %1444 = vmatpush1.bf16.msra.mxu0 0
    %1445 = vmatprep.subr.bf16.mxu0 0
    %1446 = vmatpush1.bf16.msra.mxu0 0
    %1447 = vmatprep.subr.bf16.mxu0 0
    %1448 = vmatpush1.bf16.msra.mxu0 0
    %1449 = vmatprep.mubr.bf16.mxu0 0
    %1450 = vmatmul.mubr.bf16.gmra.mrb[0].mxu0 %v1415
    %v1451 = vpop.f32.mrb[0].mxu0
    %v1452 = vadd.f32 0.0, %v1451
    %v1453 = vpop.f32.mrb[0].mxu0
    %v1454 = vadd.f32 0.0, %v1453
    %v1455 = vpop.f32.mrb[0].mxu0
    %v1456 = vpop.f32.mrb[0].mxu0
    %1457 = vdwg.mxu0
    %v1458 = vld [vmem:[%s573] sm:$0x3]
    %v1459 = vadd.f32 %v1458, %v1452
    %v1460 = vxor.u32 %v1459, 2147483648
    %v1461 = vmul.f32 %v1460, 1.442695
    %v1462 = vpow.pop %v1461
    %v1463 = vadd.f32 %v1462, 1.0
    %v1464 = vrcp.pop %v1463
    %v1465 = vmul.f32 1.0, %v1464
    %v1466 = vtanh.pop %v1459
    %v1467 = vmul.f32 %v1465, %v1325
    %1469 = vrot.lane.b32.xlu0 %v1466, 32
    %v1470 = vpop.permute.xlu0 %1469
    %v1472 = vmul.f32 %v1465, %v1470
    %1474 = vrot.lane.b32.xlu0 %v1472, 32
    %v1475 = vpop.permute.xlu0 %1474
    %v1477 = vadd.f32 %v1467, %v1475
    %v1478 = vtanh.pop %v1477
    %1480 = vrot.lane.b32.xlu0 %v1478, 32
    %v1481 = vpop.permute.xlu0 %1480
    %v1483 = vmul.f32 %v1465, %v1481
    %v1484 = vpack.c.bf16 %v1483, %v1483
    %1486 = vrot.lane.b32.xlu0 %v1484, 64
    %v1487 = vpop.permute.xlu0 %1486
    %v1489 = vsel %vm723, %v1487, 0
    %1491 = vmatprep.subr.bf16.mxu0 0
    %1492 = vmatpush1.bf16.msra.mxu0 %v719
    %1493 = vmatprep.subr.bf16.mxu0 0
    %1494 = vmatpush1.bf16.msra.mxu0 %v720
    %1495 = vmatprep.subr.bf16.mxu0 0
    %1496 = vmatpush1.bf16.msra.mxu0 0
    %1497 = vmatprep.subr.bf16.mxu0 0
    %1498 = vmatpush1.bf16.msra.mxu0 0
    %1499 = vmatprep.subr.bf16.mxu0 0
    %1500 = vmatpush1.bf16.msra.mxu0 0
    %1501 = vmatprep.subr.bf16.mxu0 0
    %1502 = vmatpush1.bf16.msra.mxu0 0
    %1503 = vmatprep.subr.bf16.mxu0 0
    %1504 = vmatpush1.bf16.msra.mxu0 0
    %1505 = vmatprep.subr.bf16.mxu0 0
    %1506 = vmatpush1.bf16.msra.mxu0 0
    %1507 = vmatprep.subr.bf16.mxu0 0
    %1508 = vmatpush1.bf16.msra.mxu0 0
    %1509 = vmatprep.subr.bf16.mxu0 0
    %1510 = vmatpush1.bf16.msra.mxu0 0
    %1511 = vmatprep.subr.bf16.mxu0 0
    %1512 = vmatpush1.bf16.msra.mxu0 0
    %1513 = vmatprep.subr.bf16.mxu0 0
    %1514 = vmatpush1.bf16.msra.mxu0 0
    %1515 = vmatprep.subr.bf16.mxu0 0
    %1516 = vmatpush1.bf16.msra.mxu0 0
    %1517 = vmatprep.subr.bf16.mxu0 0
    %1518 = vmatpush1.bf16.msra.mxu0 0
    %1519 = vmatprep.subr.bf16.mxu0 0
    %1520 = vmatpush1.bf16.msra.mxu0 0
    %1521 = vmatprep.subr.bf16.mxu0 0
    %1522 = vmatpush1.bf16.msra.mxu0 0
    %1523 = vmatprep.mubr.bf16.mxu0 0
    %1524 = vmatmul.mubr.bf16.gmra.mrb[0].mxu0 %v1489
    %v1525 = vpop.f32.mrb[0].mxu0
    %v1526 = vadd.f32 %v1454, %v1525
    %v1527 = vpop.f32.mrb[0].mxu0
    %v1528 = vpop.f32.mrb[0].mxu0
    %v1529 = vpop.f32.mrb[0].mxu0
    %1530 = vdwg.mxu0
    %v1531 = vadd.f32 %v1526, %v770
    %v1532 = vxor.u32 %v1531, 2147483648
    %v1533 = vmul.f32 %v1532, 1.442695
    %v1534 = vpow.pop %v1533
    %v1535 = vadd.f32 %v1534, 1.0
    %v1536 = vrcp.pop %v1535
    %v1537 = vmul.f32 1.0, %v1536
    %v1538 = vtanh.pop %v1531
    %v1539 = vmul.f32 %v1537, %v1397
    %1541 = vrot.lane.b32.xlu0 %v1538, 32
    %v1542 = vpop.permute.xlu0 %1541
    %v1544 = vmul.f32 %v1537, %v1542
    %1546 = vrot.lane.b32.xlu0 %v1544, 32
    %v1547 = vpop.permute.xlu0 %1546
    %v1549 = vadd.f32 %v1539, %v1547
    %v1550 = vtanh.pop %v1549
    %1552 = vrot.lane.b32.xlu0 %v1550, 32
    %v1553 = vpop.permute.xlu0 %1552
    %v1555 = vmul.f32 %v1537, %v1553
    %1557 = vrot.lane.b32.xlu0 %v1483, 64
    %v1558 = vpop.permute.xlu0 %1557
    %1561 = vrot.lane.b32.xlu0 %v1555, 96
    %v1562 = vpop.permute.xlu0 %1561
    %v1564 = vsel %vm723, %v1558, %v1562
    %v1565 = vpack.c.bf16 %v1564, %v1564
    %v1567 = vsel %vm636, %v1565, 0
    %1569 = vmatprep.subr.bf16.mxu0 %v621
    %1570 = vmatpush1.bf16.msra.mxu0 %v620
    %1571 = vmatprep.subr.bf16.mxu0 %v623
    %1572 = vmatpush1.bf16.msra.mxu0 %v622
    %1573 = vmatprep.subr.bf16.mxu0 %v625
    %1574 = vmatpush1.bf16.msra.mxu0 %v624
    %1575 = vmatprep.subr.bf16.mxu0 %v627
    %1576 = vmatpush1.bf16.msra.mxu0 %v626
    %1577 = vmatprep.subr.bf16.mxu0 0
    %1578 = vmatpush1.bf16.msra.mxu0 0
    %1579 = vmatprep.subr.bf16.mxu0 0
    %1580 = vmatpush1.bf16.msra.mxu0 0
    %1581 = vmatprep.subr.bf16.mxu0 0
    %1582 = vmatpush1.bf16.msra.mxu0 0
    %1583 = vmatprep.subr.bf16.mxu0 0
    %1584 = vmatpush1.bf16.msra.mxu0 0
    %1585 = vmatprep.subr.bf16.mxu0 0
    %1586 = vmatpush1.bf16.msra.mxu0 0
    %1587 = vmatprep.subr.bf16.mxu0 0
    %1588 = vmatpush1.bf16.msra.mxu0 0
    %1589 = vmatprep.subr.bf16.mxu0 0
    %1590 = vmatpush1.bf16.msra.mxu0 0
    %1591 = vmatprep.subr.bf16.mxu0 0
    %1592 = vmatpush1.bf16.msra.mxu0 0
    %1593 = vmatprep.subr.bf16.mxu0 0
    %1594 = vmatpush1.bf16.msra.mxu0 0
    %1595 = vmatprep.subr.bf16.mxu0 0
    %1596 = vmatpush1.bf16.msra.mxu0 0
    %1597 = vmatprep.subr.bf16.mxu0 0
    %1598 = vmatpush1.bf16.msra.mxu0 0
    %1599 = vmatprep.subr.bf16.mxu0 0
    %1600 = vmatpush1.bf16.msra.mxu0 0
    %1601 = vmatprep.mubr.bf16.mxu0 0
    %1602 = vmatmul.mubr.bf16.gmra.mrb[0].mxu0 %v1567
    %v1603 = vpop.f32.mrb[0].mxu0
    %v1604 = vadd.f32 0.0, %v1603
    %v1605 = vpop.f32.mrb[0].mxu0
    %v1606 = vadd.f32 0.0, %v1605
    %v1607 = vpop.f32.mrb[0].mxu0
    %v1608 = vpop.f32.mrb[0].mxu0
    %1609 = vdwg.mxu0
    %v1610 = vld [vmem:[%s575] sm:$0x3]
    %v1611 = vadd.f32 %v1610, %v1604
    %v1612 = vxor.u32 %v1611, 2147483648
    %v1613 = vmul.f32 %v1612, 1.442695
    %v1614 = vpow.pop %v1613
    %v1615 = vadd.f32 %v1614, 1.0
    %v1616 = vrcp.pop %v1615
    %v1617 = vmul.f32 1.0, %v1616
    %v1618 = vtanh.pop %v1611
    %v1619 = vmul.f32 %v1617, %v1477
    %1621 = vrot.lane.b32.xlu0 %v1618, 32
    %v1622 = vpop.permute.xlu0 %1621
    %v1624 = vmul.f32 %v1617, %v1622
    %1626 = vrot.lane.b32.xlu0 %v1624, 32
    %v1627 = vpop.permute.xlu0 %1626
    %v1629 = vadd.f32 %v1619, %v1627
    %v1630 = vtanh.pop %v1629
    %1632 = vrot.lane.b32.xlu0 %v1630, 32
    %v1633 = vpop.permute.xlu0 %1632
    %v1635 = vmul.f32 %v1617, %v1633
    %v1636 = vpack.c.bf16 %v1635, %v1635
    %1638 = vrot.lane.b32.xlu0 %v1636, 64
    %v1639 = vpop.permute.xlu0 %1638
    %v1641 = vsel %vm723, %v1639, 0
    %1643 = vmatprep.subr.bf16.mxu0 0
    %1644 = vmatpush1.bf16.msra.mxu0 %v719
    %1645 = vmatprep.subr.bf16.mxu0 0
    %1646 = vmatpush1.bf16.msra.mxu0 %v720
    %1647 = vmatprep.subr.bf16.mxu0 0
    %1648 = vmatpush1.bf16.msra.mxu0 0
    %1649 = vmatprep.subr.bf16.mxu0 0
    %1650 = vmatpush1.bf16.msra.mxu0 0
    %1651 = vmatprep.subr.bf16.mxu0 0
    %1652 = vmatpush1.bf16.msra.mxu0 0
    %1653 = vmatprep.subr.bf16.mxu0 0
    %1654 = vmatpush1.bf16.msra.mxu0 0
    %1655 = vmatprep.subr.bf16.mxu0 0
    %1656 = vmatpush1.bf16.msra.mxu0 0
    %1657 = vmatprep.subr.bf16.mxu0 0
    %1658 = vmatpush1.bf16.msra.mxu0 0
    %1659 = vmatprep.subr.bf16.mxu0 0
    %1660 = vmatpush1.bf16.msra.mxu0 0
    %1661 = vmatprep.subr.bf16.mxu0 0
    %1662 = vmatpush1.bf16.msra.mxu0 0
    %1663 = vmatprep.subr.bf16.mxu0 0
    %1664 = vmatpush1.bf16.msra.mxu0 0
    %1665 = vmatprep.subr.bf16.mxu0 0
    %1666 = vmatpush1.bf16.msra.mxu0 0
    %1667 = vmatprep.subr.bf16.mxu0 0
    %1668 = vmatpush1.bf16.msra.mxu0 0
    %1669 = vmatprep.subr.bf16.mxu0 0
    %1670 = vmatpush1.bf16.msra.mxu0 0
    %1671 = vmatprep.subr.bf16.mxu0 0
    %1672 = vmatpush1.bf16.msra.mxu0 0
    %1673 = vmatprep.subr.bf16.mxu0 0
    %1674 = vmatpush1.bf16.msra.mxu0 0
    %1675 = vmatprep.mubr.bf16.mxu0 0
    %1676 = vmatmul.mubr.bf16.gmra.mrb[0].mxu0 %v1641
    %v1677 = vpop.f32.mrb[0].mxu0
    %v1678 = vadd.f32 %v1606, %v1677
    %v1679 = vpop.f32.mrb[0].mxu0
    %v1680 = vpop.f32.mrb[0].mxu0
    %v1681 = vpop.f32.mrb[0].mxu0
    %1682 = vdwg.mxu0
    %v1683 = vadd.f32 %v1678, %v770
    %v1684 = vxor.u32 %v1683, 2147483648
    %v1685 = vmul.f32 %v1684, 1.442695
    %v1686 = vpow.pop %v1685
    %v1687 = vadd.f32 %v1686, 1.0
    %v1688 = vrcp.pop %v1687
    %v1689 = vmul.f32 1.0, %v1688
    %v1690 = vtanh.pop %v1683
    %v1691 = vmul.f32 %v1689, %v1549
    %1693 = vrot.lane.b32.xlu0 %v1690, 32
    %v1694 = vpop.permute.xlu0 %1693
    %v1696 = vmul.f32 %v1689, %v1694
    %1698 = vrot.lane.b32.xlu0 %v1696, 32
    %v1699 = vpop.permute.xlu0 %1698
    %v1701 = vadd.f32 %v1691, %v1699
    %v1702 = vtanh.pop %v1701
    %1704 = vrot.lane.b32.xlu0 %v1702, 32
    %v1705 = vpop.permute.xlu0 %1704
    %v1707 = vmul.f32 %v1689, %v1705
    %1709 = vrot.lane.b32.xlu0 %v1635, 64
    %v1710 = vpop.permute.xlu0 %1709
    %1713 = vrot.lane.b32.xlu0 %v1707, 96
    %v1714 = vpop.permute.xlu0 %1713
    %v1716 = vsel %vm723, %v1710, %v1714
    %v1717 = vpack.c.bf16 %v1716, %v1716
    %v1719 = vsel %vm636, %v1717, 0
    %1721 = vmatprep.subr.bf16.mxu0 %v621
    %1722 = vmatpush1.bf16.msra.mxu0 %v620
    %1723 = vmatprep.subr.bf16.mxu0 %v623
    %1724 = vmatpush1.bf16.msra.mxu0 %v622
    %1725 = vmatprep.subr.bf16.mxu0 %v625
    %1726 = vmatpush1.bf16.msra.mxu0 %v624
    %1727 = vmatprep.subr.bf16.mxu0 %v627
    %1728 = vmatpush1.bf16.msra.mxu0 %v626
    %1729 = vmatprep.subr.bf16.mxu0 0
    %1730 = vmatpush1.bf16.msra.mxu0 0
    %1731 = vmatprep.subr.bf16.mxu0 0
    %1732 = vmatpush1.bf16.msra.mxu0 0
    %1733 = vmatprep.subr.bf16.mxu0 0
    %1734 = vmatpush1.bf16.msra.mxu0 0
    %1735 = vmatprep.subr.bf16.mxu0 0
    %1736 = vmatpush1.bf16.msra.mxu0 0
    %1737 = vmatprep.subr.bf16.mxu0 0
    %1738 = vmatpush1.bf16.msra.mxu0 0
    %1739 = vmatprep.subr.bf16.mxu0 0
    %1740 = vmatpush1.bf16.msra.mxu0 0
    %1741 = vmatprep.subr.bf16.mxu0 0
    %1742 = vmatpush1.bf16.msra.mxu0 0
    %1743 = vmatprep.subr.bf16.mxu0 0
    %1744 = vmatpush1.bf16.msra.mxu0 0
    %1745 = vmatprep.subr.bf16.mxu0 0
    %1746 = vmatpush1.bf16.msra.mxu0 0
    %1747 = vmatprep.subr.bf16.mxu0 0
    %1748 = vmatpush1.bf16.msra.mxu0 0
    %1749 = vmatprep.subr.bf16.mxu0 0
    %1750 = vmatpush1.bf16.msra.mxu0 0
    %1751 = vmatprep.subr.bf16.mxu0 0
    %1752 = vmatpush1.bf16.msra.mxu0 0
    %1753 = vmatprep.mubr.bf16.mxu0 0
    %1754 = vmatmul.mubr.bf16.gmra.mrb[0].mxu0 %v1719
    %v1755 = vpop.f32.mrb[0].mxu0
    %v1756 = vadd.f32 0.0, %v1755
    %v1757 = vpop.f32.mrb[0].mxu0
    %v1758 = vadd.f32 0.0, %v1757
    %v1759 = vpop.f32.mrb[0].mxu0
    %v1760 = vpop.f32.mrb[0].mxu0
    %1761 = vdwg.mxu0
    %v1762 = vld [vmem:[%s577] sm:$0x3]
    %v1763 = vadd.f32 %v1762, %v1756
    %v1764 = vxor.u32 %v1763, 2147483648
    %v1765 = vmul.f32 %v1764, 1.442695
    %v1766 = vpow.pop %v1765
    %v1767 = vadd.f32 %v1766, 1.0
    %v1768 = vrcp.pop %v1767
    %v1769 = vmul.f32 1.0, %v1768
    %v1770 = vtanh.pop %v1763
    %v1771 = vmul.f32 %v1769, %v1629
    %1773 = vrot.lane.b32.xlu0 %v1770, 32
    %v1774 = vpop.permute.xlu0 %1773
    %v1776 = vmul.f32 %v1769, %v1774
    %1778 = vrot.lane.b32.xlu0 %v1776, 32
    %v1779 = vpop.permute.xlu0 %1778
    %v1781 = vadd.f32 %v1771, %v1779
    %v1782 = vtanh.pop %v1781
    %1784 = vrot.lane.b32.xlu0 %v1782, 32
    %v1785 = vpop.permute.xlu0 %1784
    %v1787 = vmul.f32 %v1769, %v1785
    %v1788 = vpack.c.bf16 %v1787, %v1787
    %1790 = vrot.lane.b32.xlu0 %v1788, 64
    %v1791 = vpop.permute.xlu0 %1790
    %v1793 = vsel %vm723, %v1791, 0
    %1795 = vmatprep.subr.bf16.mxu0 0
    %1796 = vmatpush1.bf16.msra.mxu0 %v719
    %1797 = vmatprep.subr.bf16.mxu0 0
    %1798 = vmatpush1.bf16.msra.mxu0 %v720
    %1799 = vmatprep.subr.bf16.mxu0 0
    %1800 = vmatpush1.bf16.msra.mxu0 0
    %1801 = vmatprep.subr.bf16.mxu0 0
    %1802 = vmatpush1.bf16.msra.mxu0 0
    %1803 = vmatprep.subr.bf16.mxu0 0
    %1804 = vmatpush1.bf16.msra.mxu0 0
    %1805 = vmatprep.subr.bf16.mxu0 0
    %1806 = vmatpush1.bf16.msra.mxu0 0
    %1807 = vmatprep.subr.bf16.mxu0 0
    %1808 = vmatpush1.bf16.msra.mxu0 0
    %1809 = vmatprep.subr.bf16.mxu0 0
    %1810 = vmatpush1.bf16.msra.mxu0 0
    %1811 = vmatprep.subr.bf16.mxu0 0
    %1812 = vmatpush1.bf16.msra.mxu0 0
    %1813 = vmatprep.subr.bf16.mxu0 0
    %1814 = vmatpush1.bf16.msra.mxu0 0
    %1815 = vmatprep.subr.bf16.mxu0 0
    %1816 = vmatpush1.bf16.msra.mxu0 0
    %1817 = vmatprep.subr.bf16.mxu0 0
    %1818 = vmatpush1.bf16.msra.mxu0 0
    %1819 = vmatprep.subr.bf16.mxu0 0
    %1820 = vmatpush1.bf16.msra.mxu0 0
    %1821 = vmatprep.subr.bf16.mxu0 0
    %1822 = vmatpush1.bf16.msra.mxu0 0
    %1823 = vmatprep.subr.bf16.mxu0 0
    %1824 = vmatpush1.bf16.msra.mxu0 0
    %1825 = vmatprep.subr.bf16.mxu0 0
    %1826 = vmatpush1.bf16.msra.mxu0 0
    %1827 = vmatprep.mubr.bf16.mxu0 0
    %1828 = vmatmul.mubr.bf16.gmra.mrb[0].mxu0 %v1793
    %v1829 = vpop.f32.mrb[0].mxu0
    %v1830 = vadd.f32 %v1758, %v1829
    %v1831 = vpop.f32.mrb[0].mxu0
    %v1832 = vpop.f32.mrb[0].mxu0
    %v1833 = vpop.f32.mrb[0].mxu0
    %1834 = vdwg.mxu0
    %v1835 = vadd.f32 %v1830, %v770
    %v1836 = vxor.u32 %v1835, 2147483648
    %v1837 = vmul.f32 %v1836, 1.442695
    %v1838 = vpow.pop %v1837
    %v1839 = vadd.f32 %v1838, 1.0
    %v1840 = vrcp.pop %v1839
    %v1841 = vmul.f32 1.0, %v1840
    %v1842 = vtanh.pop %v1835
    %v1843 = vmul.f32 %v1841, %v1701
    %1845 = vrot.lane.b32.xlu0 %v1842, 32
    %v1846 = vpop.permute.xlu0 %1845
    %v1848 = vmul.f32 %v1841, %v1846
    %1850 = vrot.lane.b32.xlu0 %v1848, 32
    %v1851 = vpop.permute.xlu0 %1850
    %v1853 = vadd.f32 %v1843, %v1851
    %v1854 = vtanh.pop %v1853
    %1856 = vrot.lane.b32.xlu0 %v1854, 32
    %v1857 = vpop.permute.xlu0 %1856
    %v1859 = vmul.f32 %v1841, %v1857
    %v1860 = vpack.c.bf16 %v1859, %v1859
    %v1861 = vlaneseq
    %v1862 = vshrl.u32 %v1861, 7
    %v1863 = vsub.s32 0, %v1862
    %v1864 = vrot.slane %v20, %v1863
    %1866 = vrot.lane.b32.xlu0 %v1860, 64
    %v1867 = vpop.permute.xlu0 %1866
    %v1872 = vunpack.c.l.b16 %v591
    %v1873 = vunpack.c.l.b16 %v592
    %v1874 = vunpack.c.l.b16 %v593
    %v1875 = vunpack.c.l.b16 %v594
    %v1876 = vpack.c.b16 %v1873, %v1872
    %v1877 = vpack.c.b16 %v1875, %v1874
    %v1881 = vsel %vm723, %v1867, 0
    %1883 = vmatprep.subr.bf16.mxu0 0
    %1884 = vmatpush1.bf16.msra.mxu0 %v1876
    %1885 = vmatprep.subr.bf16.mxu0 0
    %1886 = vmatpush1.bf16.msra.mxu0 %v1877
    %1887 = vmatprep.subr.bf16.mxu0 0
    %1888 = vmatpush1.bf16.msra.mxu0 0
    %1889 = vmatprep.subr.bf16.mxu0 0
    %1890 = vmatpush1.bf16.msra.mxu0 0
    %1891 = vmatprep.subr.bf16.mxu0 0
    %1892 = vmatpush1.bf16.msra.mxu0 0
    %1893 = vmatprep.subr.bf16.mxu0 0
    %1894 = vmatpush1.bf16.msra.mxu0 0
    %1895 = vmatprep.subr.bf16.mxu0 0
    %1896 = vmatpush1.bf16.msra.mxu0 0
    %1897 = vmatprep.subr.bf16.mxu0 0
    %1898 = vmatpush1.bf16.msra.mxu0 0
    %1899 = vmatprep.subr.bf16.mxu0 0
    %1900 = vmatpush1.bf16.msra.mxu0 0
    %1901 = vmatprep.subr.bf16.mxu0 0
    %1902 = vmatpush1.bf16.msra.mxu0 0
    %1903 = vmatprep.subr.bf16.mxu0 0
    %1904 = vmatpush1.bf16.msra.mxu0 0
    %1905 = vmatprep.subr.bf16.mxu0 0
    %1906 = vmatpush1.bf16.msra.mxu0 0
    %1907 = vmatprep.subr.bf16.mxu0 0
    %1908 = vmatpush1.bf16.msra.mxu0 0
    %1909 = vmatprep.subr.bf16.mxu0 0
    %1910 = vmatpush1.bf16.msra.mxu0 0
    %1911 = vmatprep.subr.bf16.mxu0 0
    %1912 = vmatpush1.bf16.msra.mxu0 0
    %1913 = vmatprep.subr.bf16.mxu0 0
    %1914 = vmatpush1.bf16.msra.mxu0 0
    %1915 = vmatprep.mubr.bf16.mxu0 0
    %1916 = vmatmul.mubr.bf16.gmra.mrb[0].mxu0 %v1881
    %v1917 = vpop.f32.mrb[0].mxu0
    %v1918 = vadd.f32 %v1864, %v1917
    %v1919 = vpop.f32.mrb[0].mxu0
    %v1920 = vpop.f32.mrb[0].mxu0
    %v1921 = vpop.f32.mrb[0].mxu0
    %1922 = vdwg.mxu0
    %1923 = vst [vmem:[#allocation3] sm:$0x3] %v1918
    // Predicated region
    $region14: #{forward.1} parent=1 // pred_check
      _
    $region15: #{forward.1} parent=1 // pred_check_branch
      %1925 = sbr.rel (0) target = $region17
    $region16: #{forward.1} parent=1 // pred_region
      %s1927 = ssub.s32 32, 32
      %1928 = vsyncadd [#allocation4], %s1927
      %s1930 = sshll.u32 [#allocation3], 4
      %s1931 = int_to_ptr.vmem [resolvable:$true] %s1930
      %1933 = dma.vmem_to_hbm [thread:$0]  %s1931, 32, %s3, [#allocation4]
    $region17: #{forward.1} parent=1 // pred_fallthru
      _
    // Predicated region
    $region18: #{forward.1} parent=1 // pred_check
      _
    $region19: #{forward.1} parent=1 // pred_check_branch
      %1935 = sbr.rel (0) target = $region21
    $region20: #{forward.1} parent=1 // pred_region
      %1936 = dma.done [#allocation4], 32
    $region21: #{forward.1} parent=1 // pred_fallthru
      _
    %1937 = vsyncpa [#allocation4], 1

</llo_original>
